<compile_context>
chip_gen: v7x
topology: tpu7x:2x2x1
jax: 0.10.0
libtpu: 0.0.40
codegen_flags: <defaults>
</compile_context>

<pallas_src>
import functools

import jax
import jax.numpy as jnp
from jax import lax
from jax.experimental import pallas as pl
from jax.experimental.pallas import tpu as pltpu


_VMEM_LIMIT = 32 * 1024 * 1024  # safe on v5e/v6e/v7x; blocks here are tiny


def _round_up(x, m):
    return (x + m - 1) // m * m


def _pick_hw_tile(hw):
    """Largest lane tile in {512,256,128} dividing hw with >=2 tiles, else hw."""
    for t in (512, 256, 128):
        if hw % t == 0 and hw // t >= 2:
            return t
    return hw


# ----------------------------- Pallas kernels ------------------------------ #

def _conv_lrelu_kernel(w_ref, p_ref, o_ref):
    """(Cout, Kp) @ (Kp, thw) -> (Cout, thw); LeakyReLU(0.2) epilogue.
    Inputs bf16, accumulation + epilogue f32, output bf16."""
    y = jnp.dot(w_ref[...], p_ref[0], preferred_element_type=jnp.float32)
    o_ref[0] = jnp.where(y > 0, y, 0.2 * y).astype(o_ref.dtype)


def _conv_in_lrelu_kernel(w_ref, p_ref, g_ref, b_ref, o_ref, *, eps):
    """Per-image (Cout, Kp) @ (Kp, HW) with fused InstanceNorm2d(affine=True)
    + LeakyReLU(0.2).  Per-(n, c) stats = cross-lane reduce of the f32 GEMM
    result (each grid step owns one whole image)."""
    y = jnp.dot(w_ref[...], p_ref[0], preferred_element_type=jnp.float32)   # (Cout, HW) f32
    mean = jnp.mean(y, axis=1, keepdims=True)
    var = jnp.mean(jnp.square(y - mean), axis=1, keepdims=True)             # biased (PyTorch IN)
    z = (y - mean) * lax.rsqrt(var + eps) * g_ref[...] + b_ref[...]
    o_ref[0] = jnp.where(z > 0, z, 0.2 * z).astype(o_ref.dtype)


# ------------------------------ host-side glue ----------------------------- #

def _im2col_nchw(x, k, stride, pad):
    """x: (N, C, H, W) -> K-major patches (N, C*k*k, OH*OW); K ordered (c, i, j)
    to match w.reshape(Cout, -1)."""
    N, C, H, W = x.shape
    xp = jnp.pad(x, ((0, 0), (0, 0), (pad, pad), (pad, pad)))
    OH = (H + 2 * pad - k) // stride + 1
    OW = (W + 2 * pad - k) // stride + 1
    cols = []
    for i in range(k):
        for j in range(k):
            cols.append(xp[:, :, i:i + stride * OH:stride, j:j + stride * OW:stride])
    p = jnp.stack(cols, axis=2)                          # (N, C, k*k, OH, OW)
    return p.reshape(N, C * k * k, OH * OW), OH, OW


def _pad_k(p, kp):
    """Zero-pad the K axis of (N, K, HW) patches to the packed-weight K."""
    k = p.shape[1]
    if kp > k:
        p = jnp.pad(p, ((0, 0), (0, kp - k), (0, 0)))
    return p


# ------------------------------ fused conv ops ----------------------------- #

def conv_lrelu(x, w_mat, *, k, stride, pad):
    """Conv2d(bias=False) + LeakyReLU(0.2).
    x: (N, C, H, W) bf16; w_mat: (Cout, Kp) bf16 (K zero-padded to 128)."""
    N = x.shape[0]
    cout, kp = w_mat.shape
    p, OH, OW = _im2col_nchw(x, k, stride, pad)          # (N, K, HW) bf16
    p = _pad_k(p, kp)
    HW = OH * OW
    thw = _pick_hw_tile(HW)                              # lane-dense output tile

    out = pl.pallas_call(
        _conv_lrelu_kernel,
        out_shape=jax.ShapeDtypeStruct((N, cout, HW), jnp.bfloat16),
        grid=(N, HW // thw),
        in_specs=[
            pl.BlockSpec((cout, kp), lambda n, m: (0, 0)),
            pl.BlockSpec((1, kp, thw), lambda n, m: (n, 0, m)),
        ],
        out_specs=pl.BlockSpec((1, cout, thw), lambda n, m: (n, 0, m)),
        compiler_params=pltpu.CompilerParams(
            dimension_semantics=("parallel", "parallel"),
            vmem_limit_bytes=_VMEM_LIMIT),
    )(w_mat, p)

    return out.reshape(N, cout, OH, OW)


def conv_in_lrelu(x, w_mat, gamma, beta, *, k=5, stride=2, pad=2, eps=1e-5):
    """Conv2d(k5 s2 p2, bias=False) + InstanceNorm2d(affine=True) + LeakyReLU(0.2),
    fused in one pallas_call; grid = one program per image (all K resident)."""
    N = x.shape[0]
    cout, kp = w_mat.shape
    p, OH, OW = _im2col_nchw(x, k, stride, pad)          # (N, K, HW) bf16
    p = _pad_k(p, kp)
    HW = OH * OW

    out = pl.pallas_call(
        functools.partial(_conv_in_lrelu_kernel, eps=eps),
        out_shape=jax.ShapeDtypeStruct((N, cout, HW), jnp.bfloat16),
        grid=(N,),
        in_specs=[
            pl.BlockSpec((cout, kp), lambda n: (0, 0)),
            pl.BlockSpec((1, kp, HW), lambda n: (n, 0, 0)),
            pl.BlockSpec((cout, 1), lambda n: (0, 0)),
            pl.BlockSpec((cout, 1), lambda n: (0, 0)),
        ],
        out_specs=pl.BlockSpec((1, cout, HW), lambda n: (n, 0, 0)),
        compiler_params=pltpu.CompilerParams(
            dimension_semantics=("parallel",),
            vmem_limit_bytes=_VMEM_LIMIT),
    )(w_mat, p, gamma, beta)

    return out.reshape(N, cout, OH, OW)


def final_conv(x, w_mat, *, k=4):
    """Final Conv2d(8D -> 1, k4 s1 p0, bias=False) in plain JAX (f32): output is
    a per-image scalar -- a Pallas GEMM would be >99% padding."""
    p, OH, OW = _im2col_nchw(x.astype(jnp.float32), k, 1, 0)   # (N, K, OH*OW)
    y = jnp.einsum("ok,nkm->nom", w_mat, p)                    # (N, 1, OH*OW)
    return y.reshape(-1)                                       # == .view(-1)


# --------------------------- Model params / forward ------------------------ #

def init_params(key, input_dim, network_dim):
    D = network_dim
    ks = jax.random.split(key, 11)

    def cw(k_, cout, cin, ksz):
        return 0.05 * jax.random.normal(k_, (cout, cin, ksz, ksz), jnp.float32)

    return {
        "w0": cw(ks[0], D, input_dim, 5),
        "w1": cw(ks[1], 2 * D, D, 5),
        "g1": 1.0 + 0.1 * jax.random.normal(ks[2], (2 * D,), jnp.float32),
        "b1": 0.1 * jax.random.normal(ks[3], (2 * D,), jnp.float32),
        "w2": cw(ks[4], 4 * D, 2 * D, 5),
        "g2": 1.0 + 0.1 * jax.random.normal(ks[5], (4 * D,), jnp.float32),
        "b2": 0.1 * jax.random.normal(ks[6], (4 * D,), jnp.float32),
        "w3": cw(ks[7], 8 * D, 4 * D, 5),
        "g3": 1.0 + 0.1 * jax.random.normal(ks[8], (8 * D,), jnp.float32),
        "b3": 0.1 * jax.random.normal(ks[9], (8 * D,), jnp.float32),
        "w4": cw(ks[10], 1, 8 * D, 4),
    }


def pack_params(params):
    """One-time packing: PyTorch (Cout,Cin,k,k) -> transposed GEMM matrices
    (Cout, K) with K ordered (c,i,j) and zero-padded to a multiple of 128
    (bf16 for the Pallas layers, f32 for the tiny final conv); gamma/beta as
    sublane-major (Cout, 1) f32 columns."""
    def pack_w(w, pad_to=128, dtype=jnp.bfloat16):
        wm = w.reshape(w.shape[0], -1)                    # (Cout, Cin*k*k)
        if pad_to is not None:
            kp = _round_up(wm.shape[1], pad_to)
            wm = jnp.pad(wm, ((0, 0), (0, kp - wm.shape[1])))
        return wm.astype(dtype)

    return {
        "w0": pack_w(params["w0"]),
        "w1": pack_w(params["w1"]),
        "w2": pack_w(params["w2"]),
        "w3": pack_w(params["w3"]),
        "w4": pack_w(params["w4"], pad_to=None, dtype=jnp.float32),
        "g1": params["g1"].reshape(-1, 1).astype(jnp.float32),
        "b1": params["b1"].reshape(-1, 1).astype(jnp.float32),
        "g2": params["g2"].reshape(-1, 1).astype(jnp.float32),
        "b2": params["b2"].reshape(-1, 1).astype(jnp.float32),
        "g3": params["g3"].reshape(-1, 1).astype(jnp.float32),
        "b3": params["b3"].reshape(-1, 1).astype(jnp.float32),
    }


def wgan_discriminator(packed, img):
    # Activations stay NCHW (PyTorch layout) end-to-end, bf16 between layers.
    x = img.astype(jnp.bfloat16)
    # Conv(input_dim -> D, k5 s2 p2) + LeakyReLU(0.2)                 (fused)
    x = conv_lrelu(x, packed["w0"], k=5, stride=2, pad=2)
    # 3 x [Conv(k5 s2 p2) -> InstanceNorm2d(affine) -> LeakyReLU(0.2)] (fused)
    x = conv_in_lrelu(x, packed["w1"], packed["g1"], packed["b1"])
    x = conv_in_lrelu(x, packed["w2"], packed["g2"], packed["b2"])
    x = conv_in_lrelu(x, packed["w3"], packed["g3"], packed["b3"])
    # Final Conv(8D -> 1, k4 s1 p0), then view(-1).
    return final_conv(x, packed["w4"])


if __name__ == "__main__":
    key = jax.random.PRNGKey(0)
    k_param, k_img = jax.random.split(key)

    batch, input_dim, network_dim, spatial = 2, 3, 4, 64   # 64 -> 4x4 before the k=4 conv
    params = init_params(k_param, input_dim, network_dim)
    packed = pack_params(params)
    img = jax.random.normal(k_img, (batch, input_dim, spatial, spatial), jnp.float32)

    fwd = jax.jit(wgan_discriminator)
    out = fwd(packed, img)
    jax.block_until_ready(out)
    assert out.shape == (batch,), out.shape
    assert bool(jnp.all(jnp.isfinite(out)))
    print("KERNEL_OK")
</pallas_src>

<mosaic_0001>
module attributes {stable_mosaic.version = 11 : i64} {
  func.func @_conv_lrelu_kernel(%arg0: i32, %arg1: i32, %arg2: memref<4x128xbf16, #tpu.memory_space<vmem>>, %arg3: memref<1x128x512xbf16, #tpu.memory_space<vmem>>, %arg4: memref<1x4x512xbf16, #tpu.memory_space<vmem>>) attributes {dimension_semantics = [#tpu.dimension_semantics<parallel>, #tpu.dimension_semantics<parallel>], iteration_bounds = array<i64: 2, 2>, scalar_prefetch = 0 : i64, scratch_operands = 0 : i64, tpu.core_type = #tpu.core_type<tc>, window_params = [{pipeline_mode = #tpu.pipeline_mode<synchronous>, transform_indices = @transform_0, window_bounds = array<i64: 4, 128>}, {transform_indices = @transform_1, window_bounds = array<i64: 1, 128, 512>}, {transform_indices = @transform_2, window_bounds = array<i64: 1, 4, 512>}]} {
    %c0 = arith.constant 0 : index
    %c0_0 = arith.constant 0 : index
    %0 = vector.load %arg2[%c0, %c0_0] : memref<4x128xbf16, #tpu.memory_space<vmem>>, vector<4x128xbf16>
    %c0_1 = arith.constant 0 : index
    %c0_2 = arith.constant 0 : index
    %c0_3 = arith.constant 0 : index
    %1 = vector.load %arg3[%c0_1, %c0_2, %c0_3] : memref<1x128x512xbf16, #tpu.memory_space<vmem>>, vector<1x128x512xbf16>
    %2 = vector.shape_cast %1 : vector<1x128x512xbf16> to vector<128x512xbf16>
    %cst = arith.constant dense<0.000000e+00> : vector<4x512xf32>
    %3 = tpu.matmul %0, %2, %cst {dimension_numbers = #tpu.dot_dimension_numbers<[1], [0], [0], [1], [0, 0, 1, 1], [], []>} : vector<4x128xbf16>, vector<128x512xbf16>, vector<4x512xf32> -> vector<4x512xf32>
    %cst_4 = arith.constant 0.000000e+00 : f32
    %4 = vector.broadcast %cst_4 : f32 to vector<4x512xf32>
    %5 = arith.cmpf ogt, %3, %4 : vector<4x512xf32>
    %cst_5 = arith.constant 2.000000e-01 : f32
    %6 = vector.broadcast %cst_5 : f32 to vector<4x512xf32>
    %7 = arith.mulf %6, %3 : vector<4x512xf32>
    %8 = arith.select %5, %3, %7 : vector<4x512xi1>, vector<4x512xf32>
    %9 = arith.truncf %8 : vector<4x512xf32> to vector<4x512xbf16>
    %c0_6 = arith.constant 0 : index
    %c0_7 = arith.constant 0 : index
    %c0_8 = arith.constant 0 : index
    %10 = vector.load %arg4[%c0_6, %c0_7, %c0_8] : memref<1x4x512xbf16, #tpu.memory_space<vmem>>, vector<1x4x512xbf16>
    %11 = vector.shape_cast %10 : vector<1x4x512xbf16> to vector<4x512xbf16>
    %12 = vector.shape_cast %9 : vector<4x512xbf16> to vector<1x4x512xbf16>
    tpu.vector_store %arg4[%c0_6, %c0_7, %c0_8], %12 {strides = array<i32>} : memref<1x4x512xbf16, #tpu.memory_space<vmem>>, vector<1x4x512xbf16>,
    return
  }
  func.func @transform_0(%arg0: i32, %arg1: i32) -> (i32, i32) {
    %c0_i32 = arith.constant 0 : i32
    %c0_i32_0 = arith.constant 0 : i32
    %c0_i32_1 = arith.constant 0 : i32
    return %c0_i32, %c0_i32_0 : i32, i32
  }
  func.func @transform_1(%arg0: i32, %arg1: i32) -> (i32, i32, i32) {
    %c0_i32 = arith.constant 0 : i32
    %c0_i32_0 = arith.constant 0 : i32
    return %arg0, %c0_i32, %arg1 : i32, i32, i32
  }
  func.func @transform_2(%arg0: i32, %arg1: i32) -> (i32, i32, i32) {
    %c0_i32 = arith.constant 0 : i32
    %c0_i32_0 = arith.constant 0 : i32
    return %arg0, %c0_i32, %arg1 : i32, i32, i32
  }
}

module attributes {stable_mosaic.version = 11 : i64} {
  func.func @_conv_in_lrelu_kernel(%arg0: i32, %arg1: memref<8x128xbf16, #tpu.memory_space<vmem>>, %arg2: memref<1x128x256xbf16, #tpu.memory_space<vmem>>, %arg3: memref<8x1xf32, #tpu.memory_space<vmem>>, %arg4: memref<8x1xf32, #tpu.memory_space<vmem>>, %arg5: memref<1x8x256xbf16, #tpu.memory_space<vmem>>) attributes {dimension_semantics = [#tpu.dimension_semantics<parallel>], iteration_bounds = array<i64: 2>, scalar_prefetch = 0 : i64, scratch_operands = 0 : i64, tpu.core_type = #tpu.core_type<tc>, window_params = [{pipeline_mode = #tpu.pipeline_mode<synchronous>, transform_indices = @transform_0, window_bounds = array<i64: 8, 128>}, {transform_indices = @transform_1, window_bounds = array<i64: 1, 128, 256>}, {pipeline_mode = #tpu.pipeline_mode<synchronous>, transform_indices = @transform_2, window_bounds = array<i64: 8, 1>}, {pipeline_mode = #tpu.pipeline_mode<synchronous>, transform_indices = @transform_3, window_bounds = array<i64: 8, 1>}, {transform_indices = @transform_4, window_bounds = array<i64: 1, 8, 256>}]} {
    %c0 = arith.constant 0 : index
    %c0_0 = arith.constant 0 : index
    %0 = vector.load %arg1[%c0, %c0_0] : memref<8x128xbf16, #tpu.memory_space<vmem>>, vector<8x128xbf16>
    %c0_1 = arith.constant 0 : index
    %c0_2 = arith.constant 0 : index
    %c0_3 = arith.constant 0 : index
    %1 = vector.load %arg2[%c0_1, %c0_2, %c0_3] : memref<1x128x256xbf16, #tpu.memory_space<vmem>>, vector<1x128x256xbf16>
    %2 = vector.shape_cast %1 : vector<1x128x256xbf16> to vector<128x256xbf16>
    %cst = arith.constant dense<0.000000e+00> : vector<8x256xf32>
    %3 = tpu.matmul %0, %2, %cst {dimension_numbers = #tpu.dot_dimension_numbers<[1], [0], [0], [1], [0, 0, 1, 1], [], []>} : vector<8x128xbf16>, vector<128x256xbf16>, vector<8x256xf32> -> vector<8x256xf32>
    %cst_4 = arith.constant dense<0.000000e+00> : vector<8xf32>
    %4 = vector.multi_reduction <add>, %3, %cst_4 [1] : vector<8x256xf32> to vector<8xf32>
    %5 = vector.shape_cast %4 : vector<8xf32> to vector<8x1xf32>
    %cst_5 = arith.constant 2.560000e+02 : f32
    %6 = vector.broadcast %cst_5 : f32 to vector<8x1xf32>
    %7 = arith.divf %5, %6 : vector<8x1xf32>
    %8 = vector.broadcast %7 : vector<8x1xf32> to vector<8x256xf32>
    %9 = arith.subf %3, %8 : vector<8x256xf32>
    %10 = arith.mulf %9, %9 : vector<8x256xf32>
    %cst_6 = arith.constant dense<0.000000e+00> : vector<8xf32>
    %11 = vector.multi_reduction <add>, %10, %cst_6 [1] : vector<8x256xf32> to vector<8xf32>
    %12 = vector.shape_cast %11 : vector<8xf32> to vector<8x1xf32>
    %cst_7 = arith.constant 2.560000e+02 : f32
    %13 = vector.broadcast %cst_7 : f32 to vector<8x1xf32>
    %14 = arith.divf %12, %13 : vector<8x1xf32>
    %15 = vector.broadcast %7 : vector<8x1xf32> to vector<8x256xf32>
    %16 = arith.subf %3, %15 : vector<8x256xf32>
    %cst_8 = arith.constant 9.99999974E-6 : f32
    %17 = vector.broadcast %cst_8 : f32 to vector<8x1xf32>
    %18 = arith.addf %14, %17 : vector<8x1xf32>
    %19 = math.rsqrt %18 : vector<8x1xf32>
    %20 = vector.broadcast %19 : vector<8x1xf32> to vector<8x256xf32>
    %21 = arith.mulf %16, %20 : vector<8x256xf32>
    %c0_9 = arith.constant 0 : index
    %c0_10 = arith.constant 0 : index
    %22 = vector.load %arg3[%c0_9, %c0_10] : memref<8x1xf32, #tpu.memory_space<vmem>>, vector<8x1xf32>
    %23 = vector.broadcast %22 : vector<8x1xf32> to vector<8x256xf32>
    %24 = arith.mulf %21, %23 : vector<8x256xf32>
    %c0_11 = arith.constant 0 : index
    %c0_12 = arith.constant 0 : index
    %25 = vector.load %arg4[%c0_11, %c0_12] : memref<8x1xf32, #tpu.memory_space<vmem>>, vector<8x1xf32>
    %26 = vector.broadcast %25 : vector<8x1xf32> to vector<8x256xf32>
    %27 = arith.addf %24, %26 : vector<8x256xf32>
    %cst_13 = arith.constant 0.000000e+00 : f32
    %28 = vector.broadcast %cst_13 : f32 to vector<8x256xf32>
    %29 = arith.cmpf ogt, %27, %28 : vector<8x256xf32>
    %cst_14 = arith.constant 2.000000e-01 : f32
    %30 = vector.broadcast %cst_14 : f32 to vector<8x256xf32>
    %31 = arith.mulf %30, %27 : vector<8x256xf32>
    %32 = arith.select %29, %27, %31 : vector<8x256xi1>, vector<8x256xf32>
    %33 = arith.truncf %32 : vector<8x256xf32> to vector<8x256xbf16>
    %c0_15 = arith.constant 0 : index
    %c0_16 = arith.constant 0 : index
    %c0_17 = arith.constant 0 : index
    %34 = vector.load %arg5[%c0_15, %c0_16, %c0_17] : memref<1x8x256xbf16, #tpu.memory_space<vmem>>, vector<1x8x256xbf16>
    %35 = vector.shape_cast %34 : vector<1x8x256xbf16> to vector<8x256xbf16>
    %36 = vector.shape_cast %33 : vector<8x256xbf16> to vector<1x8x256xbf16>
    tpu.vector_store %arg5[%c0_15, %c0_16, %c0_17], %36 {strides = array<i32>} : memref<1x8x256xbf16, #tpu.memory_space<vmem>>, vector<1x8x256xbf16>,
    return
  }
  func.func @transform_0(%arg0: i32) -> (i32, i32) {
    %c0_i32 = arith.constant 0 : i32
    %c0_i32_0 = arith.constant 0 : i32
    %c0_i32_1 = arith.constant 0 : i32
    return %c0_i32, %c0_i32_0 : i32, i32
  }
  func.func @transform_1(%arg0: i32) -> (i32, i32, i32) {
    %c0_i32 = arith.constant 0 : i32
    %c0_i32_0 = arith.constant 0 : i32
    %c0_i32_1 = arith.constant 0 : i32
    return %arg0, %c0_i32, %c0_i32_0 : i32, i32, i32
  }
  func.func @transform_2(%arg0: i32) -> (i32, i32) {
    %c0_i32 = arith.constant 0 : i32
    %c0_i32_0 = arith.constant 0 : i32
    %c0_i32_1 = arith.constant 0 : i32
    return %c0_i32, %c0_i32_0 : i32, i32
  }
  func.func @transform_3(%arg0: i32) -> (i32, i32) {
    %c0_i32 = arith.constant 0 : i32
    %c0_i32_0 = arith.constant 0 : i32
    %c0_i32_1 = arith.constant 0 : i32
    return %c0_i32, %c0_i32_0 : i32, i32
  }
  func.func @transform_4(%arg0: i32) -> (i32, i32, i32) {
    %c0_i32 = arith.constant 0 : i32
    %c0_i32_0 = arith.constant 0 : i32
    %c0_i32_1 = arith.constant 0 : i32
    return %arg0, %c0_i32, %c0_i32_0 : i32, i32, i32
  }
}

module attributes {stable_mosaic.version = 11 : i64} {
  func.func @_conv_in_lrelu_kernel(%arg0: i32, %arg1: memref<16x256xbf16, #tpu.memory_space<vmem>>, %arg2: memref<1x256x64xbf16, #tpu.memory_space<vmem>>, %arg3: memref<16x1xf32, #tpu.memory_space<vmem>>, %arg4: memref<16x1xf32, #tpu.memory_space<vmem>>, %arg5: memref<1x16x64xbf16, #tpu.memory_space<vmem>>) attributes {dimension_semantics = [#tpu.dimension_semantics<parallel>], iteration_bounds = array<i64: 2>, scalar_prefetch = 0 : i64, scratch_operands = 0 : i64, tpu.core_type = #tpu.core_type<tc>, window_params = [{pipeline_mode = #tpu.pipeline_mode<synchronous>, transform_indices = @transform_0, window_bounds = array<i64: 16, 256>}, {transform_indices = @transform_1, window_bounds = array<i64: 1, 256, 64>}, {pipeline_mode = #tpu.pipeline_mode<synchronous>, transform_indices = @transform_2, window_bounds = array<i64: 16, 1>}, {pipeline_mode = #tpu.pipeline_mode<synchronous>, transform_indices = @transform_3, window_bounds = array<i64: 16, 1>}, {transform_indices = @transform_4, window_bounds = array<i64: 1, 16, 64>}]} {
    %c0 = arith.constant 0 : index
    %c0_0 = arith.constant 0 : index
    %0 = vector.load %arg1[%c0, %c0_0] : memref<16x256xbf16, #tpu.memory_space<vmem>>, vector<16x256xbf16>
    %c0_1 = arith.constant 0 : index
    %c0_2 = arith.constant 0 : index
    %c0_3 = arith.constant 0 : index
    %1 = vector.load %arg2[%c0_1, %c0_2, %c0_3] : memref<1x256x64xbf16, #tpu.memory_space<vmem>>, vector<1x256x64xbf16>
    %2 = vector.shape_cast %1 : vector<1x256x64xbf16> to vector<256x64xbf16>
    %cst = arith.constant dense<0.000000e+00> : vector<16x64xf32>
    %3 = tpu.matmul %0, %2, %cst {dimension_numbers = #tpu.dot_dimension_numbers<[1], [0], [0], [1], [0, 0, 1, 1], [], []>} : vector<16x256xbf16>, vector<256x64xbf16>, vector<16x64xf32> -> vector<16x64xf32>
    %cst_4 = arith.constant dense<0.000000e+00> : vector<16xf32>
    %4 = vector.multi_reduction <add>, %3, %cst_4 [1] : vector<16x64xf32> to vector<16xf32>
    %5 = vector.shape_cast %4 : vector<16xf32> to vector<16x1xf32>
    %cst_5 = arith.constant 6.400000e+01 : f32
    %6 = vector.broadcast %cst_5 : f32 to vector<16x1xf32>
    %7 = arith.divf %5, %6 : vector<16x1xf32>
    %8 = vector.broadcast %7 : vector<16x1xf32> to vector<16x64xf32>
    %9 = arith.subf %3, %8 : vector<16x64xf32>
    %10 = arith.mulf %9, %9 : vector<16x64xf32>
    %cst_6 = arith.constant dense<0.000000e+00> : vector<16xf32>
    %11 = vector.multi_reduction <add>, %10, %cst_6 [1] : vector<16x64xf32> to vector<16xf32>
    %12 = vector.shape_cast %11 : vector<16xf32> to vector<16x1xf32>
    %cst_7 = arith.constant 6.400000e+01 : f32
    %13 = vector.broadcast %cst_7 : f32 to vector<16x1xf32>
    %14 = arith.divf %12, %13 : vector<16x1xf32>
    %15 = vector.broadcast %7 : vector<16x1xf32> to vector<16x64xf32>
    %16 = arith.subf %3, %15 : vector<16x64xf32>
    %cst_8 = arith.constant 9.99999974E-6 : f32
    %17 = vector.broadcast %cst_8 : f32 to vector<16x1xf32>
    %18 = arith.addf %14, %17 : vector<16x1xf32>
    %19 = math.rsqrt %18 : vector<16x1xf32>
    %20 = vector.broadcast %19 : vector<16x1xf32> to vector<16x64xf32>
    %21 = arith.mulf %16, %20 : vector<16x64xf32>
    %c0_9 = arith.constant 0 : index
    %c0_10 = arith.constant 0 : index
    %22 = vector.load %arg3[%c0_9, %c0_10] : memref<16x1xf32, #tpu.memory_space<vmem>>, vector<16x1xf32>
    %23 = vector.broadcast %22 : vector<16x1xf32> to vector<16x64xf32>
    %24 = arith.mulf %21, %23 : vector<16x64xf32>
    %c0_11 = arith.constant 0 : index
    %c0_12 = arith.constant 0 : index
    %25 = vector.load %arg4[%c0_11, %c0_12] : memref<16x1xf32, #tpu.memory_space<vmem>>, vector<16x1xf32>
    %26 = vector.broadcast %25 : vector<16x1xf32> to vector<16x64xf32>
    %27 = arith.addf %24, %26 : vector<16x64xf32>
    %cst_13 = arith.constant 0.000000e+00 : f32
    %28 = vector.broadcast %cst_13 : f32 to vector<16x64xf32>
    %29 = arith.cmpf ogt, %27, %28 : vector<16x64xf32>
    %cst_14 = arith.constant 2.000000e-01 : f32
    %30 = vector.broadcast %cst_14 : f32 to vector<16x64xf32>
    %31 = arith.mulf %30, %27 : vector<16x64xf32>
    %32 = arith.select %29, %27, %31 : vector<16x64xi1>, vector<16x64xf32>
    %33 = arith.truncf %32 : vector<16x64xf32> to vector<16x64xbf16>
    %c0_15 = arith.constant 0 : index
    %c0_16 = arith.constant 0 : index
    %c0_17 = arith.constant 0 : index
    %34 = vector.load %arg5[%c0_15, %c0_16, %c0_17] : memref<1x16x64xbf16, #tpu.memory_space<vmem>>, vector<1x16x64xbf16>
    %35 = vector.shape_cast %34 : vector<1x16x64xbf16> to vector<16x64xbf16>
    %36 = vector.shape_cast %33 : vector<16x64xbf16> to vector<1x16x64xbf16>
    tpu.vector_store %arg5[%c0_15, %c0_16, %c0_17], %36 {strides = array<i32>} : memref<1x16x64xbf16, #tpu.memory_space<vmem>>, vector<1x16x64xbf16>,
    return
  }
  func.func @transform_0(%arg0: i32) -> (i32, i32) {
    %c0_i32 = arith.constant 0 : i32
    %c0_i32_0 = arith.constant 0 : i32
    %c0_i32_1 = arith.constant 0 : i32
    return %c0_i32, %c0_i32_0 : i32, i32
  }
  func.func @transform_1(%arg0: i32) -> (i32, i32, i32) {
    %c0_i32 = arith.constant 0 : i32
    %c0_i32_0 = arith.constant 0 : i32
    %c0_i32_1 = arith.constant 0 : i32
    return %arg0, %c0_i32, %c0_i32_0 : i32, i32, i32
  }
  func.func @transform_2(%arg0: i32) -> (i32, i32) {
    %c0_i32 = arith.constant 0 : i32
    %c0_i32_0 = arith.constant 0 : i32
    %c0_i32_1 = arith.constant 0 : i32
    return %c0_i32, %c0_i32_0 : i32, i32
  }
  func.func @transform_3(%arg0: i32) -> (i32, i32) {
    %c0_i32 = arith.constant 0 : i32
    %c0_i32_0 = arith.constant 0 : i32
    %c0_i32_1 = arith.constant 0 : i32
    return %c0_i32, %c0_i32_0 : i32, i32
  }
  func.func @transform_4(%arg0: i32) -> (i32, i32, i32) {
    %c0_i32 = arith.constant 0 : i32
    %c0_i32_0 = arith.constant 0 : i32
    %c0_i32_1 = arith.constant 0 : i32
    return %arg0, %c0_i32, %c0_i32_0 : i32, i32, i32
  }
}

module attributes {stable_mosaic.version = 11 : i64} {
  func.func @_conv_in_lrelu_kernel(%arg0: i32, %arg1: memref<32x512xbf16, #tpu.memory_space<vmem>>, %arg2: memref<1x512x16xbf16, #tpu.memory_space<vmem>>, %arg3: memref<32x1xf32, #tpu.memory_space<vmem>>, %arg4: memref<32x1xf32, #tpu.memory_space<vmem>>, %arg5: memref<1x32x16xbf16, #tpu.memory_space<vmem>>) attributes {dimension_semantics = [#tpu.dimension_semantics<parallel>], iteration_bounds = array<i64: 2>, scalar_prefetch = 0 : i64, scratch_operands = 0 : i64, tpu.core_type = #tpu.core_type<tc>, window_params = [{pipeline_mode = #tpu.pipeline_mode<synchronous>, transform_indices = @transform_0, window_bounds = array<i64: 32, 512>}, {transform_indices = @transform_1, window_bounds = array<i64: 1, 512, 16>}, {pipeline_mode = #tpu.pipeline_mode<synchronous>, transform_indices = @transform_2, window_bounds = array<i64: 32, 1>}, {pipeline_mode = #tpu.pipeline_mode<synchronous>, transform_indices = @transform_3, window_bounds = array<i64: 32, 1>}, {transform_indices = @transform_4, window_bounds = array<i64: 1, 32, 16>}]} {
    %c0 = arith.constant 0 : index
    %c0_0 = arith.constant 0 : index
    %0 = vector.load %arg1[%c0, %c0_0] : memref<32x512xbf16, #tpu.memory_space<vmem>>, vector<32x512xbf16>
    %c0_1 = arith.constant 0 : index
    %c0_2 = arith.constant 0 : index
    %c0_3 = arith.constant 0 : index
    %1 = vector.load %arg2[%c0_1, %c0_2, %c0_3] : memref<1x512x16xbf16, #tpu.memory_space<vmem>>, vector<1x512x16xbf16>
    %2 = vector.shape_cast %1 : vector<1x512x16xbf16> to vector<512x16xbf16>
    %cst = arith.constant dense<0.000000e+00> : vector<32x16xf32>
    %3 = tpu.matmul %0, %2, %cst {dimension_numbers = #tpu.dot_dimension_numbers<[1], [0], [0], [1], [0, 0, 1, 1], [], []>} : vector<32x512xbf16>, vector<512x16xbf16>, vector<32x16xf32> -> vector<32x16xf32>
    %cst_4 = arith.constant dense<0.000000e+00> : vector<32xf32>
    %4 = vector.multi_reduction <add>, %3, %cst_4 [1] : vector<32x16xf32> to vector<32xf32>
    %5 = vector.shape_cast %4 : vector<32xf32> to vector<32x1xf32>
    %cst_5 = arith.constant 1.600000e+01 : f32
    %6 = vector.broadcast %cst_5 : f32 to vector<32x1xf32>
    %7 = arith.divf %5, %6 : vector<32x1xf32>
    %8 = vector.broadcast %7 : vector<32x1xf32> to vector<32x16xf32>
    %9 = arith.subf %3, %8 : vector<32x16xf32>
    %10 = arith.mulf %9, %9 : vector<32x16xf32>
    %cst_6 = arith.constant dense<0.000000e+00> : vector<32xf32>
    %11 = vector.multi_reduction <add>, %10, %cst_6 [1] : vector<32x16xf32> to vector<32xf32>
    %12 = vector.shape_cast %11 : vector<32xf32> to vector<32x1xf32>
    %cst_7 = arith.constant 1.600000e+01 : f32
    %13 = vector.broadcast %cst_7 : f32 to vector<32x1xf32>
    %14 = arith.divf %12, %13 : vector<32x1xf32>
    %15 = vector.broadcast %7 : vector<32x1xf32> to vector<32x16xf32>
    %16 = arith.subf %3, %15 : vector<32x16xf32>
    %cst_8 = arith.constant 9.99999974E-6 : f32
    %17 = vector.broadcast %cst_8 : f32 to vector<32x1xf32>
    %18 = arith.addf %14, %17 : vector<32x1xf32>
    %19 = math.rsqrt %18 : vector<32x1xf32>
    %20 = vector.broadcast %19 : vector<32x1xf32> to vector<32x16xf32>
    %21 = arith.mulf %16, %20 : vector<32x16xf32>
    %c0_9 = arith.constant 0 : index
    %c0_10 = arith.constant 0 : index
    %22 = vector.load %arg3[%c0_9, %c0_10] : memref<32x1xf32, #tpu.memory_space<vmem>>, vector<32x1xf32>
    %23 = vector.broadcast %22 : vector<32x1xf32> to vector<32x16xf32>
    %24 = arith.mulf %21, %23 : vector<32x16xf32>
    %c0_11 = arith.constant 0 : index
    %c0_12 = arith.constant 0 : index
    %25 = vector.load %arg4[%c0_11, %c0_12] : memref<32x1xf32, #tpu.memory_space<vmem>>, vector<32x1xf32>
    %26 = vector.broadcast %25 : vector<32x1xf32> to vector<32x16xf32>
    %27 = arith.addf %24, %26 : vector<32x16xf32>
    %cst_13 = arith.constant 0.000000e+00 : f32
    %28 = vector.broadcast %cst_13 : f32 to vector<32x16xf32>
    %29 = arith.cmpf ogt, %27, %28 : vector<32x16xf32>
    %cst_14 = arith.constant 2.000000e-01 : f32
    %30 = vector.broadcast %cst_14 : f32 to vector<32x16xf32>
    %31 = arith.mulf %30, %27 : vector<32x16xf32>
    %32 = arith.select %29, %27, %31 : vector<32x16xi1>, vector<32x16xf32>
    %33 = arith.truncf %32 : vector<32x16xf32> to vector<32x16xbf16>
    %c0_15 = arith.constant 0 : index
    %c0_16 = arith.constant 0 : index
    %c0_17 = arith.constant 0 : index
    %34 = vector.load %arg5[%c0_15, %c0_16, %c0_17] : memref<1x32x16xbf16, #tpu.memory_space<vmem>>, vector<1x32x16xbf16>
    %35 = vector.shape_cast %34 : vector<1x32x16xbf16> to vector<32x16xbf16>
    %36 = vector.shape_cast %33 : vector<32x16xbf16> to vector<1x32x16xbf16>
    tpu.vector_store %arg5[%c0_15, %c0_16, %c0_17], %36 {strides = array<i32>} : memref<1x32x16xbf16, #tpu.memory_space<vmem>>, vector<1x32x16xbf16>,
    return
  }
  func.func @transform_0(%arg0: i32) -> (i32, i32) {
    %c0_i32 = arith.constant 0 : i32
    %c0_i32_0 = arith.constant 0 : i32
    %c0_i32_1 = arith.constant 0 : i32
    return %c0_i32, %c0_i32_0 : i32, i32
  }
  func.func @transform_1(%arg0: i32) -> (i32, i32, i32) {
    %c0_i32 = arith.constant 0 : i32
    %c0_i32_0 = arith.constant 0 : i32
    %c0_i32_1 = arith.constant 0 : i32
    return %arg0, %c0_i32, %c0_i32_0 : i32, i32, i32
  }
  func.func @transform_2(%arg0: i32) -> (i32, i32) {
    %c0_i32 = arith.constant 0 : i32
    %c0_i32_0 = arith.constant 0 : i32
    %c0_i32_1 = arith.constant 0 : i32
    return %c0_i32, %c0_i32_0 : i32, i32
  }
  func.func @transform_3(%arg0: i32) -> (i32, i32) {
    %c0_i32 = arith.constant 0 : i32
    %c0_i32_0 = arith.constant 0 : i32
    %c0_i32_1 = arith.constant 0 : i32
    return %c0_i32, %c0_i32_0 : i32, i32
  }
  func.func @transform_4(%arg0: i32) -> (i32, i32, i32) {
    %c0_i32 = arith.constant 0 : i32
    %c0_i32_0 = arith.constant 0 : i32
    %c0_i32_1 = arith.constant 0 : i32
    return %arg0, %c0_i32, %c0_i32_0 : i32, i32, i32
  }
}

</mosaic_0001>

<llo_original>
// kernel: wgan_discriminator.4
$region0: #{wgan_discriminator.4}
  #allocation0 [shape = 'u32[]', space=smem, size = 0x4, offset = 0x4, fixed_abs, tag = 'smem constant byte address 0x4 - core index']
  #allocation1 [shape = 'u32[144,128]{1,0:T(1,128)}', space=vmem, size = 0x12000, scoped, tag = 'internal scratch']
  %s0 = inlined_call_operand.vmem [shape: bf16[4,128], index: 0, kind: input, shape index: {}]
  %s1 = inlined_call_operand.vmem [shape: bf16[2,128,1024], index: 1, kind: input, shape index: {}]
  %s2 = inlined_call_operand.vmem [shape: bf16[2,4,1024], index: 2, kind: output, shape index: {}]
  %s3 = sld [smem:[#allocation0]]
  $region64: #{wgan_discriminator.4} parent=0
    _
  %s5 = ssub.s32 1, %s3
  %s6 = scalar_select 0, %s5, %s3
  $region1: #{wgan_discriminator.4} parent=0
    #allocation2 [shape = 'u8[262144]{0}', space=vmem, size = 0x40000, scoped, tag = 'input window, operand 1']
    loop: start=0, step=1, limit=6
    $region2: #{wgan_discriminator.4} parent=1 // loop_pre_header
      _
    $region3: #{wgan_discriminator.4} parent=1 // loop_header
      %s8 = sphi 0, %s12
      %p9 = scmp.ge.s32.totalorder %s8, 6
      %s15 = sphi 0, %s27
      %s16 = sphi 0, %s23
      %s17 = sphi 0, %s15
      %s18 = sphi 0, %s16
      %s19 = sphi 0, %s17
      %s20 = sphi 0, %s18
      %s28 = sphi 0, %s28
      %s30 = sphi 0, %s28
      %s31 = sphi 0, %s30
      %s45 = sphi 0, %s31
      %s53 = sphi 0, %s55
      %s56 = sphi 0, %s53
      %s57 = sphi 0, %s56
      %s73 = sphi 0, %s57
      %s81 = sphi 0, %s83
      %s84 = sphi 0, %s81
      %s85 = sphi 0, %s84
      %s101 = sphi 0, %s85
    $region4: #{wgan_discriminator.4} parent=1 // loop_header_branch
      %11 = sbr.rel (%p9) target = $region8
    $region5: #{wgan_discriminator.4} parent=1 // loop_body
      %s13 = ssub.s32 %s8, 1
      %s14 = ssub.s32 %s8, 2
      %s21 = sadd.s32 1, %s16
      %p22 = scmp.ge.s32.totalorder %s21, 2
      %s23 = scalar_select %p22, 0, %s21
      %s24 = sadd.s32 1, %s15
      %s25 = scalar_select %p22, %s24, %s15
      %p26 = scmp.ge.s32.totalorder %s25, 2
      %s27 = scalar_select %p26, 0, %s25
      %s29 = sadd.s32 %s28, 1
      %p32 = scmp.eq.s32.totalorder %s8, 3
      %p33 = scmp.ne.s32.totalorder %s28, %s30
      %p34 = scmp.eq.s32.totalorder %s8, 0
      %p35 = por %p33, %p34
      %p36 = scmp.ne.s32.totalorder %s28, %s30
      %p37 = scmp.eq.s32.totalorder %s13, 3
      %p38 = por %p36, %p37
      %p39 = scmp.ne.s32.totalorder %s30, %s31
      %p40 = scmp.eq.s32.totalorder %s13, 0
      %p41 = por %p39, %p40
      %p42 = scmp.ne.s32.totalorder %s30, %s31
      %p43 = scmp.eq.s32.totalorder %s14, 3
      %p44 = por %p42, %p43
      %p46 = scmp.ne.s32.totalorder %s31, %s45
      %p47 = scmp.eq.s32.totalorder %s14, 0
      %p48 = por %p46, %p47
      %s49 = ssub.s32 %s15, %s27
      %s50 = ssub.s32 %s16, %s23
      %s51 = sor.u32 %s49, %s50
      %p52 = scmp.eq.s32.totalorder %s51, 0
      %s54 = sadd.s32 %s53, 1
      %s55 = scalar_select %p52, %s53, %s54
      %p58 = pneg %p52
      %p59 = scmp.eq.s32.totalorder %s8, 3
      %p60 = por %p58, %p59
      %p61 = scmp.ne.s32.totalorder %s53, %s56
      %p62 = scmp.eq.s32.totalorder %s8, 0
      %p63 = por %p61, %p62
      %p64 = scmp.ne.s32.totalorder %s53, %s56
      %p65 = scmp.eq.s32.totalorder %s13, 3
      %p66 = por %p64, %p65
      %p67 = scmp.ne.s32.totalorder %s56, %s57
      %p68 = scmp.eq.s32.totalorder %s13, 0
      %p69 = por %p67, %p68
      %p70 = scmp.ne.s32.totalorder %s56, %s57
      %p71 = scmp.eq.s32.totalorder %s14, 3
      %p72 = por %p70, %p71
      %p74 = scmp.ne.s32.totalorder %s57, %s73
      %p75 = scmp.eq.s32.totalorder %s14, 0
      %p76 = por %p74, %p75
      %s77 = ssub.s32 %s15, %s27
      %s78 = ssub.s32 %s16, %s23
      %s79 = sor.u32 %s77, %s78
      %p80 = scmp.eq.s32.totalorder %s79, 0
      %s82 = sadd.s32 %s81, 1
      %s83 = scalar_select %p80, %s81, %s82
      %p86 = pneg %p80
      %p87 = scmp.eq.s32.totalorder %s8, 3
      %p88 = por %p86, %p87
      %p89 = scmp.ne.s32.totalorder %s81, %s84
      %p90 = scmp.eq.s32.totalorder %s8, 0
      %p91 = por %p89, %p90
      %p92 = scmp.ne.s32.totalorder %s81, %s84
      %p93 = scmp.eq.s32.totalorder %s13, 3
      %p94 = por %p92, %p93
      %p95 = scmp.ne.s32.totalorder %s84, %s85
      %p96 = scmp.eq.s32.totalorder %s13, 0
      %p97 = por %p95, %p96
      %p98 = scmp.ne.s32.totalorder %s84, %s85
      %p99 = scmp.eq.s32.totalorder %s14, 3
      %p100 = por %p98, %p99
      %p102 = scmp.ne.s32.totalorder %s85, %s101
      %p103 = scmp.eq.s32.totalorder %s14, 0
      %p104 = por %p102, %p103
      %p105 = scmp.le.s32.totalorder 1, %s8
      %p106 = scmp.lt.s32.totalorder %s8, 5
      %p107 = pnand %p105, %p106
      %p108 = pneg %p107
      // Predicated region
      $region9: #{wgan_discriminator.4} parent=5 // pred_check
        _
      $region10: #{wgan_discriminator.4} parent=5 // pred_check_branch
        %110 = sbr.rel (%p107) target = $region12
      $region11: #{wgan_discriminator.4} parent=5 // pred_region
        %s111 = ssub.s32 %s8, 1
        // Predicated region
        $region13: #{wgan_discriminator.4} parent=11 // pred_check
          %p112 = pneg %p41
        $region14: #{wgan_discriminator.4} parent=11 // pred_check_branch
          %114 = sbr.rel (%p112) target = $region16
        $region15: #{wgan_discriminator.4} parent=11 // pred_region
          _
        $region16: #{wgan_discriminator.4} parent=11 // pred_fallthru
          _
      $region12: #{wgan_discriminator.4} parent=5 // pred_fallthru
        _
      %p115 = scmp.lt.s32.totalorder %s8, 4
      // Predicated region
      $region17: #{wgan_discriminator.4} parent=5 // pred_check
        %p116 = pneg %p115
      $region18: #{wgan_discriminator.4} parent=5 // pred_check_branch
        %118 = sbr.rel (%p116) target = $region20
      $region19: #{wgan_discriminator.4} parent=5 // pred_region
        // Predicated region
        $region21: #{wgan_discriminator.4} parent=19 // pred_check
          %p119 = pneg %p63
        $region22: #{wgan_discriminator.4} parent=19 // pred_check_branch
          %121 = sbr.rel (%p119) target = $region24
        $region23: #{wgan_discriminator.4} parent=19 // pred_region
          %s122 = sand.u32 %s53, 1
          %s123 = sand.u32 %s53, 1
          %s124 = smul.addr %s123, 256
          %s125 = scalar_lea.vmem [#allocation2], %s124
          %s126 = smul.u32 4, %s16
          %s127 = smul.addr %s15, 128
          %s128 = sadd.s32 %s126, %s127
          %s129 = smul.addr %s128, 4
          %s130 = scalar_lea.vmem %s1, %s129
          // Predicated region
          $region25: #{wgan_discriminator.4} parent=23 // pred_check
            _
          $region26: #{wgan_discriminator.4} parent=23 // pred_check_branch
            %132 = sbr.rel (0) target = $region28
          $region27: #{wgan_discriminator.4} parent=23 // pred_region
            // Predicated region
            $region29: #{wgan_discriminator.4} parent=27 // pred_check
              _
            $region30: #{wgan_discriminator.4} parent=27 // pred_check_branch
              %134 = sbr.rel (0) target = $region32
            $region31: #{wgan_discriminator.4} parent=27 // pred_region
              loop: start=0, step=1, limit=1
              $region33: #{wgan_discriminator.4} parent=31 // loop_pre_header
                _
              $region34: #{wgan_discriminator.4} parent=31 // loop_header
                %s136 = sphi 0, %s140
                %p137 = scmp.ge.s32.totalorder %s136, 1
                %s141 = sphi %s130, %s130
                %s142 = sphi %s125, %s125
              $region35: #{wgan_discriminator.4} parent=31 // loop_header_branch
                %139 = sbr.rel (%p137) target = $region39
              $region36: #{wgan_discriminator.4} parent=31 // loop_body
                %v143 = vld [vmem:[%s141] sm:$0xff]
                %144 = vst [vmem:[%s142] sm:$0xff] %v143
                %v145 = vld [vmem:[%s141 + $0x8] sm:$0xff]
                %146 = vst [vmem:[%s142 + $0x8] sm:$0xff] %v145
                %v147 = vld [vmem:[%s141 + $0x20] sm:$0xff]
                %148 = vst [vmem:[%s142 + $0x10] sm:$0xff] %v147
                %v149 = vld [vmem:[%s141 + $0x28] sm:$0xff]
                %150 = vst [vmem:[%s142 + $0x18] sm:$0xff] %v149
                %v151 = vld [vmem:[%s141 + $0x40] sm:$0xff]
                %152 = vst [vmem:[%s142 + $0x20] sm:$0xff] %v151
                %v153 = vld [vmem:[%s141 + $0x48] sm:$0xff]
                %154 = vst [vmem:[%s142 + $0x28] sm:$0xff] %v153
                %v155 = vld [vmem:[%s141 + $0x60] sm:$0xff]
                %156 = vst [vmem:[%s142 + $0x30] sm:$0xff] %v155
                %v157 = vld [vmem:[%s141 + $0x68] sm:$0xff]
                %158 = vst [vmem:[%s142 + $0x38] sm:$0xff] %v157
                %v159 = vld [vmem:[%s141 + $0x80] sm:$0xff]
                %160 = vst [vmem:[%s142 + $0x40] sm:$0xff] %v159
                %v161 = vld [vmem:[%s141 + $0x88] sm:$0xff]
                %162 = vst [vmem:[%s142 + $0x48] sm:$0xff] %v161
                %v163 = vld [vmem:[%s141 + $0xa0] sm:$0xff]
                %164 = vst [vmem:[%s142 + $0x50] sm:$0xff] %v163
                %v165 = vld [vmem:[%s141 + $0xa8] sm:$0xff]
                %166 = vst [vmem:[%s142 + $0x58] sm:$0xff] %v165
                %v167 = vld [vmem:[%s141 + $0xc0] sm:$0xff]
                %168 = vst [vmem:[%s142 + $0x60] sm:$0xff] %v167
                %v169 = vld [vmem:[%s141 + $0xc8] sm:$0xff]
                %170 = vst [vmem:[%s142 + $0x68] sm:$0xff] %v169
                %v171 = vld [vmem:[%s141 + $0xe0] sm:$0xff]
                %172 = vst [vmem:[%s142 + $0x70] sm:$0xff] %v171
                %v173 = vld [vmem:[%s141 + $0xe8] sm:$0xff]
                %174 = vst [vmem:[%s142 + $0x78] sm:$0xff] %v173
                %v175 = vld [vmem:[%s141 + $0x100] sm:$0xff]
                %176 = vst [vmem:[%s142 + $0x80] sm:$0xff] %v175
                %v177 = vld [vmem:[%s141 + $0x108] sm:$0xff]
                %178 = vst [vmem:[%s142 + $0x88] sm:$0xff] %v177
                %v179 = vld [vmem:[%s141 + $0x120] sm:$0xff]
                %180 = vst [vmem:[%s142 + $0x90] sm:$0xff] %v179
                %v181 = vld [vmem:[%s141 + $0x128] sm:$0xff]
                %182 = vst [vmem:[%s142 + $0x98] sm:$0xff] %v181
                %v183 = vld [vmem:[%s141 + $0x140] sm:$0xff]
                %184 = vst [vmem:[%s142 + $0xa0] sm:$0xff] %v183
                %v185 = vld [vmem:[%s141 + $0x148] sm:$0xff]
                %186 = vst [vmem:[%s142 + $0xa8] sm:$0xff] %v185
                %v187 = vld [vmem:[%s141 + $0x160] sm:$0xff]
                %188 = vst [vmem:[%s142 + $0xb0] sm:$0xff] %v187
                %v189 = vld [vmem:[%s141 + $0x168] sm:$0xff]
                %190 = vst [vmem:[%s142 + $0xb8] sm:$0xff] %v189
                %v191 = vld [vmem:[%s141 + $0x180] sm:$0xff]
                %192 = vst [vmem:[%s142 + $0xc0] sm:$0xff] %v191
                %v193 = vld [vmem:[%s141 + $0x188] sm:$0xff]
                %194 = vst [vmem:[%s142 + $0xc8] sm:$0xff] %v193
                %v195 = vld [vmem:[%s141 + $0x1a0] sm:$0xff]
                %196 = vst [vmem:[%s142 + $0xd0] sm:$0xff] %v195
                %v197 = vld [vmem:[%s141 + $0x1a8] sm:$0xff]
                %198 = vst [vmem:[%s142 + $0xd8] sm:$0xff] %v197
                %v199 = vld [vmem:[%s141 + $0x1c0] sm:$0xff]
                %200 = vst [vmem:[%s142 + $0xe0] sm:$0xff] %v199
                %v201 = vld [vmem:[%s141 + $0x1c8] sm:$0xff]
                %202 = vst [vmem:[%s142 + $0xe8] sm:$0xff] %v201
                %v203 = vld [vmem:[%s141 + $0x1e0] sm:$0xff]
                %204 = vst [vmem:[%s142 + $0xf0] sm:$0xff] %v203
                %v205 = vld [vmem:[%s141 + $0x1e8] sm:$0xff]
                %206 = vst [vmem:[%s142 + $0xf8] sm:$0xff] %v205
              $region37: #{wgan_discriminator.4} parent=31 // loop_footer
                %s140 = sadd.s32 1, %s136
              $region38: #{wgan_discriminator.4} parent=31 // loop_footer_branch
                %135 = sbr.rel target = $region34
              $region39: #{wgan_discriminator.4} parent=31 // loop_exit
                _
            $region32: #{wgan_discriminator.4} parent=27 // pred_fallthru
              _
            // Predicated region
            $region40: #{wgan_discriminator.4} parent=27 // pred_check
              _
            $region41: #{wgan_discriminator.4} parent=27 // pred_check_branch
              %208 = sbr.rel target = $region43
            $region42: #{wgan_discriminator.4} parent=27 // pred_region
              _
            $region43: #{wgan_discriminator.4} parent=27 // pred_fallthru
              _
          $region28: #{wgan_discriminator.4} parent=23 // pred_fallthru
            _
          %209 = vnop
        $region24: #{wgan_discriminator.4} parent=19 // pred_fallthru
          _
      $region20: #{wgan_discriminator.4} parent=5 // pred_fallthru
        _
      %p210 = scmp.le.s32.totalorder 1, %s8
      %p211 = scmp.lt.s32.totalorder %s8, 5
      %p212 = pnand %p210, %p211
      %p213 = pneg %p212
      // Predicated region
      $region44: #{wgan_discriminator.4} parent=5 // pred_check
        _
      $region45: #{wgan_discriminator.4} parent=5 // pred_check_branch
        %215 = sbr.rel (%p212) target = $region47
      $region46: #{wgan_discriminator.4} parent=5 // pred_region
        %s216 = ssub.s32 %s8, 1
        %s217 = sand.u32 %s56, 1
        %s218 = sand.u32 %s56, 1
        %s219 = smul.addr %s218, 256
        %s220 = scalar_lea.vmem [#allocation2], %s219
        // Predicated region
        $region48: #{wgan_discriminator.4} parent=46 // pred_check
          %p221 = pneg %p69
        $region49: #{wgan_discriminator.4} parent=46 // pred_check_branch
          %223 = sbr.rel (%p221) target = $region51
        $region50: #{wgan_discriminator.4} parent=46 // pred_region
          _
        $region51: #{wgan_discriminator.4} parent=46 // pred_fallthru
          _
        %p224 = pneg %p41
        %p225 = pneg %p38
        %s226 = sand.u32 %s56, 1
        %s227 = sand.u32 %s56, 1
        %s228 = smul.addr %s227, 256
        %s229 = scalar_lea.vmem [#allocation2], %s228
        %p230 = pneg %p69
        %p231 = pneg %p66
        %p232 = pneg %p97
        %p233 = pneg %p94
        %s234 = smul.u32 4, %s18
        %p235 = scmp.lt.s32.totalorder %s17, 1
        %s236 = scalar_select %p235, %s17, 1
        %p237 = scmp.lt.s32.totalorder %s234, 7
        %s238 = scalar_select %p237, %s234, 7
        %s239 = smul.addr %s236, 8
        %s240 = sadd.s32 %s238, %s239
        %s241 = smul.addr %s240, 2
        %s242 = scalar_lea.vmem %s2, %s241
        %s243 = smul.u32 4, %s18
        %s244 = smul.u32 4, %s18
        %p245 = scmp.lt.s32.totalorder %s17, 1
        %s246 = scalar_select %p245, %s17, 1
        %p247 = scmp.lt.s32.totalorder %s244, 7
        %s248 = scalar_select %p247, %s244, 7
        %s249 = smul.addr %s246, 8
        %s250 = sadd.s32 %s248, %s249
        %s251 = smul.addr %s250, 2
        %s252 = scalar_lea.vmem %s2, %s251
        %s253 = smul.u32 4, %s18
        %v255 = vld [vmem:[%s0] sm:$0x3]
        %v256 = vld [vmem:[%s220] sm:$0xff]
        %v257 = vld [vmem:[%s220 + $0x8] sm:$0xff]
        %v258 = vld [vmem:[%s220 + $0x10] sm:$0xff]
        %v259 = vld [vmem:[%s220 + $0x18] sm:$0xff]
        %v260 = vld [vmem:[%s220 + $0x20] sm:$0xff]
        %v261 = vld [vmem:[%s220 + $0x28] sm:$0xff]
        %v262 = vld [vmem:[%s220 + $0x30] sm:$0xff]
        %v263 = vld [vmem:[%s220 + $0x38] sm:$0xff]
        %v264 = vld [vmem:[%s220 + $0x40] sm:$0xff]
        %v265 = vld [vmem:[%s220 + $0x48] sm:$0xff]
        %v266 = vld [vmem:[%s220 + $0x50] sm:$0xff]
        %v267 = vld [vmem:[%s220 + $0x58] sm:$0xff]
        %v268 = vld [vmem:[%s220 + $0x60] sm:$0xff]
        %v269 = vld [vmem:[%s220 + $0x68] sm:$0xff]
        %v270 = vld [vmem:[%s220 + $0x70] sm:$0xff]
        %v271 = vld [vmem:[%s220 + $0x78] sm:$0xff]
        %v272 = vld [vmem:[%s220 + $0x80] sm:$0xff]
        %v273 = vld [vmem:[%s220 + $0x88] sm:$0xff]
        %v274 = vld [vmem:[%s220 + $0x90] sm:$0xff]
        %v275 = vld [vmem:[%s220 + $0x98] sm:$0xff]
        %v276 = vld [vmem:[%s220 + $0xa0] sm:$0xff]
        %v277 = vld [vmem:[%s220 + $0xa8] sm:$0xff]
        %v278 = vld [vmem:[%s220 + $0xb0] sm:$0xff]
        %v279 = vld [vmem:[%s220 + $0xb8] sm:$0xff]
        %v280 = vld [vmem:[%s220 + $0xc0] sm:$0xff]
        %v281 = vld [vmem:[%s220 + $0xc8] sm:$0xff]
        %v282 = vld [vmem:[%s220 + $0xd0] sm:$0xff]
        %v283 = vld [vmem:[%s220 + $0xd8] sm:$0xff]
        %v284 = vld [vmem:[%s220 + $0xe0] sm:$0xff]
        %v285 = vld [vmem:[%s220 + $0xe8] sm:$0xff]
        %v286 = vld [vmem:[%s220 + $0xf0] sm:$0xff]
        %v287 = vld [vmem:[%s220 + $0xf8] sm:$0xff]
        %v320 = vunpack.c.l.b16 %v256
        %v321 = vunpack.c.h.b16 %v256
        %v322 = vunpack.c.l.b16 %v257
        %v323 = vunpack.c.h.b16 %v257
        %v324 = vunpack.c.l.b16 %v258
        %v325 = vunpack.c.h.b16 %v258
        %v326 = vunpack.c.l.b16 %v259
        %v327 = vunpack.c.h.b16 %v259
        %v328 = vunpack.c.l.b16 %v260
        %v329 = vunpack.c.h.b16 %v260
        %v330 = vunpack.c.l.b16 %v261
        %v331 = vunpack.c.h.b16 %v261
        %v332 = vunpack.c.l.b16 %v262
        %v333 = vunpack.c.h.b16 %v262
        %v334 = vunpack.c.l.b16 %v263
        %v335 = vunpack.c.h.b16 %v263
        %v336 = vunpack.c.l.b16 %v264
        %v337 = vunpack.c.h.b16 %v264
        %v338 = vunpack.c.l.b16 %v265
        %v339 = vunpack.c.h.b16 %v265
        %v340 = vunpack.c.l.b16 %v266
        %v341 = vunpack.c.h.b16 %v266
        %v342 = vunpack.c.l.b16 %v267
        %v343 = vunpack.c.h.b16 %v267
        %v344 = vunpack.c.l.b16 %v268
        %v345 = vunpack.c.h.b16 %v268
        %v346 = vunpack.c.l.b16 %v269
        %v347 = vunpack.c.h.b16 %v269
        %v348 = vunpack.c.l.b16 %v270
        %v349 = vunpack.c.h.b16 %v270
        %v350 = vunpack.c.l.b16 %v271
        %v351 = vunpack.c.h.b16 %v271
        %v352 = vunpack.c.l.b16 %v272
        %v353 = vunpack.c.h.b16 %v272
        %v354 = vunpack.c.l.b16 %v273
        %v355 = vunpack.c.h.b16 %v273
        %v356 = vunpack.c.l.b16 %v274
        %v357 = vunpack.c.h.b16 %v274
        %v358 = vunpack.c.l.b16 %v275
        %v359 = vunpack.c.h.b16 %v275
        %v360 = vunpack.c.l.b16 %v276
        %v361 = vunpack.c.h.b16 %v276
        %v362 = vunpack.c.l.b16 %v277
        %v363 = vunpack.c.h.b16 %v277
        %v364 = vunpack.c.l.b16 %v278
        %v365 = vunpack.c.h.b16 %v278
        %v366 = vunpack.c.l.b16 %v279
        %v367 = vunpack.c.h.b16 %v279
        %v368 = vunpack.c.l.b16 %v280
        %v369 = vunpack.c.h.b16 %v280
        %v370 = vunpack.c.l.b16 %v281
        %v371 = vunpack.c.h.b16 %v281
        %v372 = vunpack.c.l.b16 %v282
        %v373 = vunpack.c.h.b16 %v282
        %v374 = vunpack.c.l.b16 %v283
        %v375 = vunpack.c.h.b16 %v283
        %v376 = vunpack.c.l.b16 %v284
        %v377 = vunpack.c.h.b16 %v284
        %v378 = vunpack.c.l.b16 %v285
        %v379 = vunpack.c.h.b16 %v285
        %v380 = vunpack.c.l.b16 %v286
        %v381 = vunpack.c.h.b16 %v286
        %v382 = vunpack.c.l.b16 %v287
        %v383 = vunpack.c.h.b16 %v287
        %v384 = vpack.c.b16 %v324, %v320
        %v385 = vpack.c.b16 %v325, %v321
        %v386 = vpack.c.b16 %v326, %v322
        %v387 = vpack.c.b16 %v327, %v323
        %v388 = vpack.c.b16 %v332, %v328
        %v389 = vpack.c.b16 %v333, %v329
        %v390 = vpack.c.b16 %v334, %v330
        %v391 = vpack.c.b16 %v335, %v331
        %v392 = vpack.c.b16 %v340, %v336
        %v393 = vpack.c.b16 %v341, %v337
        %v394 = vpack.c.b16 %v342, %v338
        %v395 = vpack.c.b16 %v343, %v339
        %v396 = vpack.c.b16 %v348, %v344
        %v397 = vpack.c.b16 %v349, %v345
        %v398 = vpack.c.b16 %v350, %v346
        %v399 = vpack.c.b16 %v351, %v347
        %v400 = vpack.c.b16 %v356, %v352
        %v401 = vpack.c.b16 %v357, %v353
        %v402 = vpack.c.b16 %v358, %v354
        %v403 = vpack.c.b16 %v359, %v355
        %v404 = vpack.c.b16 %v364, %v360
        %v405 = vpack.c.b16 %v365, %v361
        %v406 = vpack.c.b16 %v366, %v362
        %v407 = vpack.c.b16 %v367, %v363
        %v408 = vpack.c.b16 %v372, %v368
        %v409 = vpack.c.b16 %v373, %v369
        %v410 = vpack.c.b16 %v374, %v370
        %v411 = vpack.c.b16 %v375, %v371
        %v412 = vpack.c.b16 %v380, %v376
        %v413 = vpack.c.b16 %v381, %v377
        %v414 = vpack.c.b16 %v382, %v378
        %v415 = vpack.c.b16 %v383, %v379
        %448 = vmatprep.subr.bf16.mxu0 %v385
        %449 = vmatpush1.bf16.msra.mxu0 %v384
        %450 = vmatprep.subr.bf16.mxu0 %v389
        %451 = vmatpush1.bf16.msra.mxu0 %v388
        %452 = vmatprep.subr.bf16.mxu0 %v393
        %453 = vmatpush1.bf16.msra.mxu0 %v392
        %454 = vmatprep.subr.bf16.mxu0 %v397
        %455 = vmatpush1.bf16.msra.mxu0 %v396
        %456 = vmatprep.subr.bf16.mxu0 %v401
        %457 = vmatpush1.bf16.msra.mxu0 %v400
        %458 = vmatprep.subr.bf16.mxu0 %v405
        %459 = vmatpush1.bf16.msra.mxu0 %v404
        %460 = vmatprep.subr.bf16.mxu0 %v409
        %461 = vmatpush1.bf16.msra.mxu0 %v408
        %462 = vmatprep.subr.bf16.mxu0 %v413
        %463 = vmatpush1.bf16.msra.mxu0 %v412
        %464 = vmatprep.subr.bf16.mxu0 0
        %465 = vmatpush1.bf16.msra.mxu0 0
        %466 = vmatprep.subr.bf16.mxu0 0
        %467 = vmatpush1.bf16.msra.mxu0 0
        %468 = vmatprep.subr.bf16.mxu0 0
        %469 = vmatpush1.bf16.msra.mxu0 0
        %470 = vmatprep.subr.bf16.mxu0 0
        %471 = vmatpush1.bf16.msra.mxu0 0
        %472 = vmatprep.subr.bf16.mxu0 0
        %473 = vmatpush1.bf16.msra.mxu0 0
        %474 = vmatprep.subr.bf16.mxu0 0
        %475 = vmatpush1.bf16.msra.mxu0 0
        %476 = vmatprep.subr.bf16.mxu0 0
        %477 = vmatpush1.bf16.msra.mxu0 0
        %478 = vmatprep.subr.bf16.mxu0 0
        %479 = vmatpush1.bf16.msra.mxu0 0
        %480 = vmatprep.mubr.bf16.mxu0 0
        %481 = vmatmul.mubr.bf16.gmra.mrb[0].mxu0 %v255
        %v482 = vpop.f32.mrb[0].mxu0
        %v483 = vadd.f32 0.0, %v482
        %v484 = vpop.f32.mrb[0].mxu0
        %v485 = vadd.f32 0.0, %v484
        %v486 = vpop.f32.mrb[0].mxu0
        %v487 = vpop.f32.mrb[0].mxu0
        %488 = vdwg.mxu0
        %489 = vmatprep.subr.bf16.mxu0 %v387
        %490 = vmatpush1.bf16.msra.mxu0 %v386
        %491 = vmatprep.subr.bf16.mxu0 %v391
        %492 = vmatpush1.bf16.msra.mxu0 %v390
        %493 = vmatprep.subr.bf16.mxu0 %v395
        %494 = vmatpush1.bf16.msra.mxu0 %v394
        %495 = vmatprep.subr.bf16.mxu0 %v399
        %496 = vmatpush1.bf16.msra.mxu0 %v398
        %497 = vmatprep.subr.bf16.mxu0 %v403
        %498 = vmatpush1.bf16.msra.mxu0 %v402
        %499 = vmatprep.subr.bf16.mxu0 %v407
        %500 = vmatpush1.bf16.msra.mxu0 %v406
        %501 = vmatprep.subr.bf16.mxu0 %v411
        %502 = vmatpush1.bf16.msra.mxu0 %v410
        %503 = vmatprep.subr.bf16.mxu0 %v415
        %504 = vmatpush1.bf16.msra.mxu0 %v414
        %505 = vmatprep.subr.bf16.mxu0 0
        %506 = vmatpush1.bf16.msra.mxu0 0
        %507 = vmatprep.subr.bf16.mxu0 0
        %508 = vmatpush1.bf16.msra.mxu0 0
        %509 = vmatprep.subr.bf16.mxu0 0
        %510 = vmatpush1.bf16.msra.mxu0 0
        %511 = vmatprep.subr.bf16.mxu0 0
        %512 = vmatpush1.bf16.msra.mxu0 0
        %513 = vmatprep.subr.bf16.mxu0 0
        %514 = vmatpush1.bf16.msra.mxu0 0
        %515 = vmatprep.subr.bf16.mxu0 0
        %516 = vmatpush1.bf16.msra.mxu0 0
        %517 = vmatprep.subr.bf16.mxu0 0
        %518 = vmatpush1.bf16.msra.mxu0 0
        %519 = vmatprep.subr.bf16.mxu0 0
        %520 = vmatpush1.bf16.msra.mxu0 0
        %521 = vmatprep.mubr.bf16.mxu0 0
        %522 = vmatmul.mubr.bf16.gmra.mrb[0].mxu0 %v255
        %v523 = vpop.f32.mrb[0].mxu0
        %v524 = vadd.f32 0.0, %v523
        %v525 = vpop.f32.mrb[0].mxu0
        %v526 = vadd.f32 0.0, %v525
        %v527 = vpop.f32.mrb[0].mxu0
        %v528 = vpop.f32.mrb[0].mxu0
        %529 = vdwg.mxu0
        %vm530 = vcmp.gt.f32.partialorder %v483, 0.0
        %vm531 = vcmp.gt.f32.partialorder %v485, 0.0
        %vm532 = vcmp.gt.f32.partialorder %v524, 0.0
        %vm533 = vcmp.gt.f32.partialorder %v526, 0.0
        %v534 = vmul.f32 %v483, 0.2
        %v535 = vmul.f32 %v485, 0.2
        %v536 = vmul.f32 %v524, 0.2
        %v537 = vmul.f32 %v526, 0.2
        %v538 = vsel %vm530, %v483, %v534
        %v539 = vsel %vm531, %v485, %v535
        %v540 = vsel %vm532, %v524, %v536
        %v541 = vsel %vm533, %v526, %v537
        %v542 = vpack.c.bf16 %v538, %v538
        %v543 = vpack.c.bf16 %v539, %v539
        %v544 = vpack.c.bf16 %v540, %v540
        %v545 = vpack.c.bf16 %v541, %v541
        %v550 = vcombine.low %v542, %v543
        %v551 = vcombine.low %v544, %v545
        %v553 = vunpack.c.l.s4 1983009808
        %v554 = vunpack.c.0.s8 %v553
        %v555 = vlaneseq
        %v556 = vshrl.u32 %v555, 7
        %v557 = vsub.s32 %v554, %v556
        %v558 = vrot.slane %v550, %v557
        %v560 = vunpack.c.l.s4 1983009808
        %v561 = vunpack.c.0.s8 %v560
        %v562 = vlaneseq
        %v563 = vshrl.u32 %v562, 7
        %v564 = vsub.s32 %v561, %v563
        %v565 = vrot.slane %v551, %v564
        %v566 = vcombine.low %v558, %v565
        %568 = vst [vmem:[%s252] sm:$0xff] %v566
        %s569 = smul.u32 4, %s18
        %p570 = scmp.lt.s32.totalorder %s17, 1
        %s571 = scalar_select %p570, %s17, 1
        %p572 = scmp.lt.s32.totalorder %s569, 7
        %s573 = scalar_select %p572, %s569, 7
        %s574 = smul.addr %s571, 8
        %s575 = sadd.s32 %s573, %s574
        %s576 = smul.addr %s575, 2
        %s577 = scalar_lea.vmem %s2, %s576
        // Predicated region
        $region52: #{wgan_discriminator.4} parent=46 // pred_check
          %p578 = pneg %p94
        $region53: #{wgan_discriminator.4} parent=46 // pred_check_branch
          %580 = sbr.rel (%p578) target = $region55
        $region54: #{wgan_discriminator.4} parent=46 // pred_region
          %s581 = smul.u32 4, %s18
        $region55: #{wgan_discriminator.4} parent=46 // pred_fallthru
          _
      $region47: #{wgan_discriminator.4} parent=5 // pred_fallthru
        _
      %p582 = scmp.le.s32.totalorder 2, %s8
      // Predicated region
      $region56: #{wgan_discriminator.4} parent=5 // pred_check
        %p583 = pneg %p582
      $region57: #{wgan_discriminator.4} parent=5 // pred_check_branch
        %585 = sbr.rel (%p583) target = $region59
      $region58: #{wgan_discriminator.4} parent=5 // pred_region
        %s586 = ssub.s32 %s8, 2
        // Predicated region
        $region60: #{wgan_discriminator.4} parent=58 // pred_check
          %p587 = pneg %p100
        $region61: #{wgan_discriminator.4} parent=58 // pred_check_branch
          %589 = sbr.rel (%p587) target = $region63
        $region62: #{wgan_discriminator.4} parent=58 // pred_region
          %s590 = smul.u32 4, %s20
          %p591 = scmp.lt.s32.totalorder %s19, 1
          %s592 = scalar_select %p591, %s19, 1
          %p593 = scmp.lt.s32.totalorder %s590, 7
          %s594 = scalar_select %p593, %s590, 7
          %s595 = smul.addr %s592, 8
          %s596 = sadd.s32 %s594, %s595
          %s597 = smul.addr %s596, 2
          %s598 = scalar_lea.vmem %s2, %s597
        $region63: #{wgan_discriminator.4} parent=58 // pred_fallthru
          _
      $region59: #{wgan_discriminator.4} parent=5 // pred_fallthru
        _
    $region6: #{wgan_discriminator.4} parent=1 // loop_footer
      %s12 = sadd.s32 1, %s8
    $region7: #{wgan_discriminator.4} parent=1 // loop_footer_branch
      %7 = sbr.rel target = $region3
    $region8: #{wgan_discriminator.4} parent=1 // loop_exit
      _

// kernel: wgan_discriminator.5
$region0: #{wgan_discriminator.5}
  #allocation0 [shape = 'u32[]', space=smem, size = 0x4, offset = 0x4, fixed_abs, tag = 'smem constant byte address 0x4 - core index']
  #allocation1 [shape = 'u32[144,128]{1,0:T(1,128)}', space=vmem, size = 0x12000, scoped, tag = 'internal scratch']
  %s0 = inlined_call_operand.vmem [shape: bf16[8,128], index: 0, kind: input, shape index: {}]
  %s1 = inlined_call_operand.vmem [shape: bf16[2,128,256], index: 1, kind: input, shape index: {}]
  %s2 = inlined_call_operand.vmem [shape: f32[8,1], index: 2, kind: input, shape index: {}]
  %s3 = inlined_call_operand.vmem [shape: f32[8,1], index: 3, kind: input, shape index: {}]
  %s4 = inlined_call_operand.vmem [shape: bf16[2,8,256], index: 4, kind: output, shape index: {}]
  %s5 = sld [smem:[#allocation0]]
  $region49: #{wgan_discriminator.5} parent=0
    _
  %s7 = ssub.s32 1, %s5
  %s8 = scalar_select 0, %s7, %s5
  loop: start=0, step=1, limit=4
  $region2: #{wgan_discriminator.5} parent=0 // loop_pre_header
    _
  $region3: #{wgan_discriminator.5} parent=0 // loop_header
    %s10 = sphi 0, %s14
    %p11 = scmp.ge.s32.totalorder %s10, 4
    %s18 = sphi 0, %s18
    %s20 = sphi 0, %s18
    %s21 = sphi 0, %s20
    %s35 = sphi 0, %s21
    %s41 = sphi 0, %s43
    %s44 = sphi 0, %s41
    %s45 = sphi 0, %s44
    %s61 = sphi 0, %s45
    %s65 = sphi 0, %s65
    %s67 = sphi 0, %s65
    %s68 = sphi 0, %s67
    %s82 = sphi 0, %s68
    %s86 = sphi 0, %s86
    %s88 = sphi 0, %s86
    %s89 = sphi 0, %s88
    %s103 = sphi 0, %s89
    %s109 = sphi 0, %s111
    %s112 = sphi 0, %s109
    %s113 = sphi 0, %s112
    %s129 = sphi 0, %s113
  $region4: #{wgan_discriminator.5} parent=0 // loop_header_branch
    %13 = sbr.rel (%p11) target = $region8
  $region5: #{wgan_discriminator.5} parent=0 // loop_body
    %s15 = ssub.s32 %s10, 1
    %s16 = ssub.s32 %s10, 2
    %s17 = sadd.s32 %s10, 1
    %s19 = sadd.s32 %s18, 1
    %p22 = scmp.eq.s32.totalorder %s10, 1
    %p23 = scmp.ne.s32.totalorder %s18, %s20
    %p24 = scmp.eq.s32.totalorder %s10, 0
    %p25 = por %p23, %p24
    %p26 = scmp.ne.s32.totalorder %s18, %s20
    %p27 = scmp.eq.s32.totalorder %s15, 1
    %p28 = por %p26, %p27
    %p29 = scmp.ne.s32.totalorder %s20, %s21
    %p30 = scmp.eq.s32.totalorder %s15, 0
    %p31 = por %p29, %p30
    %p32 = scmp.ne.s32.totalorder %s20, %s21
    %p33 = scmp.eq.s32.totalorder %s16, 1
    %p34 = por %p32, %p33
    %p36 = scmp.ne.s32.totalorder %s21, %s35
    %p37 = scmp.eq.s32.totalorder %s16, 0
    %p38 = por %p36, %p37
    %s39 = ssub.s32 %s10, %s17
    %p40 = scmp.eq.s32.totalorder %s39, 0
    %s42 = sadd.s32 %s41, 1
    %s43 = scalar_select %p40, %s41, %s42
    %p46 = pneg %p40
    %p47 = scmp.eq.s32.totalorder %s10, 1
    %p48 = por %p46, %p47
    %p49 = scmp.ne.s32.totalorder %s41, %s44
    %p50 = scmp.eq.s32.totalorder %s10, 0
    %p51 = por %p49, %p50
    %p52 = scmp.ne.s32.totalorder %s41, %s44
    %p53 = scmp.eq.s32.totalorder %s15, 1
    %p54 = por %p52, %p53
    %p55 = scmp.ne.s32.totalorder %s44, %s45
    %p56 = scmp.eq.s32.totalorder %s15, 0
    %p57 = por %p55, %p56
    %p58 = scmp.ne.s32.totalorder %s44, %s45
    %p59 = scmp.eq.s32.totalorder %s16, 1
    %p60 = por %p58, %p59
    %p62 = scmp.ne.s32.totalorder %s45, %s61
    %p63 = scmp.eq.s32.totalorder %s16, 0
    %p64 = por %p62, %p63
    %s66 = sadd.s32 %s65, 1
    %p69 = scmp.eq.s32.totalorder %s10, 1
    %p70 = scmp.ne.s32.totalorder %s65, %s67
    %p71 = scmp.eq.s32.totalorder %s10, 0
    %p72 = por %p70, %p71
    %p73 = scmp.ne.s32.totalorder %s65, %s67
    %p74 = scmp.eq.s32.totalorder %s15, 1
    %p75 = por %p73, %p74
    %p76 = scmp.ne.s32.totalorder %s67, %s68
    %p77 = scmp.eq.s32.totalorder %s15, 0
    %p78 = por %p76, %p77
    %p79 = scmp.ne.s32.totalorder %s67, %s68
    %p80 = scmp.eq.s32.totalorder %s16, 1
    %p81 = por %p79, %p80
    %p83 = scmp.ne.s32.totalorder %s68, %s82
    %p84 = scmp.eq.s32.totalorder %s16, 0
    %p85 = por %p83, %p84
    %s87 = sadd.s32 %s86, 1
    %p90 = scmp.eq.s32.totalorder %s10, 1
    %p91 = scmp.ne.s32.totalorder %s86, %s88
    %p92 = scmp.eq.s32.totalorder %s10, 0
    %p93 = por %p91, %p92
    %p94 = scmp.ne.s32.totalorder %s86, %s88
    %p95 = scmp.eq.s32.totalorder %s15, 1
    %p96 = por %p94, %p95
    %p97 = scmp.ne.s32.totalorder %s88, %s89
    %p98 = scmp.eq.s32.totalorder %s15, 0
    %p99 = por %p97, %p98
    %p100 = scmp.ne.s32.totalorder %s88, %s89
    %p101 = scmp.eq.s32.totalorder %s16, 1
    %p102 = por %p100, %p101
    %p104 = scmp.ne.s32.totalorder %s89, %s103
    %p105 = scmp.eq.s32.totalorder %s16, 0
    %p106 = por %p104, %p105
    %s107 = ssub.s32 %s10, %s17
    %p108 = scmp.eq.s32.totalorder %s107, 0
    %s110 = sadd.s32 %s109, 1
    %s111 = scalar_select %p108, %s109, %s110
    %p114 = pneg %p108
    %p115 = scmp.eq.s32.totalorder %s10, 1
    %p116 = por %p114, %p115
    %p117 = scmp.ne.s32.totalorder %s109, %s112
    %p118 = scmp.eq.s32.totalorder %s10, 0
    %p119 = por %p117, %p118
    %p120 = scmp.ne.s32.totalorder %s109, %s112
    %p121 = scmp.eq.s32.totalorder %s15, 1
    %p122 = por %p120, %p121
    %p123 = scmp.ne.s32.totalorder %s112, %s113
    %p124 = scmp.eq.s32.totalorder %s15, 0
    %p125 = por %p123, %p124
    %p126 = scmp.ne.s32.totalorder %s112, %s113
    %p127 = scmp.eq.s32.totalorder %s16, 1
    %p128 = por %p126, %p127
    %p130 = scmp.ne.s32.totalorder %s113, %s129
    %p131 = scmp.eq.s32.totalorder %s16, 0
    %p132 = por %p130, %p131
    %p133 = scmp.le.s32.totalorder 1, %s10
    %p134 = scmp.lt.s32.totalorder %s10, 3
    %p135 = pnand %p133, %p134
    %p136 = pneg %p135
    // Predicated region
    $region9: #{wgan_discriminator.5} parent=5 // pred_check
      _
    $region10: #{wgan_discriminator.5} parent=5 // pred_check_branch
      %138 = sbr.rel (%p135) target = $region12
    $region11: #{wgan_discriminator.5} parent=5 // pred_region
      %s139 = ssub.s32 %s10, 1
      // Predicated region
      $region13: #{wgan_discriminator.5} parent=11 // pred_check
        %p140 = pneg %p31
      $region14: #{wgan_discriminator.5} parent=11 // pred_check_branch
        %142 = sbr.rel (%p140) target = $region16
      $region15: #{wgan_discriminator.5} parent=11 // pred_region
        _
      $region16: #{wgan_discriminator.5} parent=11 // pred_fallthru
        _
      // Predicated region
      $region17: #{wgan_discriminator.5} parent=11 // pred_check
        %p143 = pneg %p78
      $region18: #{wgan_discriminator.5} parent=11 // pred_check_branch
        %145 = sbr.rel (%p143) target = $region20
      $region19: #{wgan_discriminator.5} parent=11 // pred_region
        _
      $region20: #{wgan_discriminator.5} parent=11 // pred_fallthru
        _
      // Predicated region
      $region21: #{wgan_discriminator.5} parent=11 // pred_check
        %p146 = pneg %p99
      $region22: #{wgan_discriminator.5} parent=11 // pred_check_branch
        %148 = sbr.rel (%p146) target = $region24
      $region23: #{wgan_discriminator.5} parent=11 // pred_region
        _
      $region24: #{wgan_discriminator.5} parent=11 // pred_fallthru
        _
    $region12: #{wgan_discriminator.5} parent=5 // pred_fallthru
      _
    %p149 = scmp.lt.s32.totalorder %s10, 2
    // Predicated region
    $region25: #{wgan_discriminator.5} parent=5 // pred_check
      %p150 = pneg %p149
    $region26: #{wgan_discriminator.5} parent=5 // pred_check_branch
      %152 = sbr.rel (%p150) target = $region28
    $region27: #{wgan_discriminator.5} parent=5 // pred_region
      // Predicated region
      $region29: #{wgan_discriminator.5} parent=27 // pred_check
        %p153 = pneg %p51
      $region30: #{wgan_discriminator.5} parent=27 // pred_check_branch
        %155 = sbr.rel (%p153) target = $region32
      $region31: #{wgan_discriminator.5} parent=27 // pred_region
        %p156 = scmp.lt.s32.totalorder %s10, 1
        %s157 = scalar_select %p156, %s10, 1
        %s158 = smul.addr %s157, 32
        %s159 = smul.addr %s158, 4
        %s160 = scalar_lea.vmem %s1, %s159
      $region32: #{wgan_discriminator.5} parent=27 // pred_fallthru
        _
    $region28: #{wgan_discriminator.5} parent=5 // pred_fallthru
      _
    %p161 = scmp.le.s32.totalorder 1, %s10
    %p162 = scmp.lt.s32.totalorder %s10, 3
    %p163 = pnand %p161, %p162
    %p164 = pneg %p163
    // Predicated region
    $region33: #{wgan_discriminator.5} parent=5 // pred_check
      _
    $region34: #{wgan_discriminator.5} parent=5 // pred_check_branch
      %166 = sbr.rel (%p163) target = $region36
    $region35: #{wgan_discriminator.5} parent=5 // pred_region
      %s167 = ssub.s32 %s10, 1
      %p168 = pneg %p31
      %p169 = pneg %p28
      %p170 = scmp.lt.s32.totalorder %s15, 1
      %s171 = scalar_select %p170, %s15, 1
      %s172 = smul.addr %s171, 32
      %s173 = smul.addr %s172, 4
      %s174 = scalar_lea.vmem %s1, %s173
      %p175 = pneg %p57
      %p176 = pneg %p54
      %p177 = pneg %p78
      %p178 = pneg %p75
      %p179 = pneg %p99
      %p180 = pneg %p96
      %p181 = pneg %p125
      %p182 = pneg %p122
      %p183 = scmp.lt.s32.totalorder %s15, 1
      %s184 = scalar_select %p183, %s15, 1
      %s185 = smul.addr %s184, 2
      %s186 = smul.addr %s185, 4
      %s187 = scalar_lea.vmem %s4, %s186
      %p188 = scmp.lt.s32.totalorder %s15, 1
      %s189 = scalar_select %p188, %s15, 1
      %s190 = smul.addr %s189, 32
      %s191 = smul.addr %s190, 4
      %s192 = scalar_lea.vmem %s1, %s191
      %p193 = scmp.lt.s32.totalorder %s15, 1
      %s194 = scalar_select %p193, %s15, 1
      %s195 = smul.addr %s194, 2
      %s196 = smul.addr %s195, 4
      %s197 = scalar_lea.vmem %s4, %s196
      %v199 = vld [vmem:[%s0] sm:$0xf]
      %v200 = vld [vmem:[%s192] sm:$0xff]
      %v201 = vld [vmem:[%s192 + $0x8] sm:$0xff]
      %v202 = vld [vmem:[%s192 + $0x10] sm:$0xff]
      %v203 = vld [vmem:[%s192 + $0x18] sm:$0xff]
      %v204 = vld [vmem:[%s192 + $0x20] sm:$0xff]
      %v205 = vld [vmem:[%s192 + $0x28] sm:$0xff]
      %v206 = vld [vmem:[%s192 + $0x30] sm:$0xff]
      %v207 = vld [vmem:[%s192 + $0x38] sm:$0xff]
      %v208 = vld [vmem:[%s192 + $0x40] sm:$0xff]
      %v209 = vld [vmem:[%s192 + $0x48] sm:$0xff]
      %v210 = vld [vmem:[%s192 + $0x50] sm:$0xff]
      %v211 = vld [vmem:[%s192 + $0x58] sm:$0xff]
      %v212 = vld [vmem:[%s192 + $0x60] sm:$0xff]
      %v213 = vld [vmem:[%s192 + $0x68] sm:$0xff]
      %v214 = vld [vmem:[%s192 + $0x70] sm:$0xff]
      %v215 = vld [vmem:[%s192 + $0x78] sm:$0xff]
      %v232 = vunpack.c.l.b16 %v200
      %v233 = vunpack.c.h.b16 %v200
      %v234 = vunpack.c.l.b16 %v201
      %v235 = vunpack.c.h.b16 %v201
      %v236 = vunpack.c.l.b16 %v202
      %v237 = vunpack.c.h.b16 %v202
      %v238 = vunpack.c.l.b16 %v203
      %v239 = vunpack.c.h.b16 %v203
      %v240 = vunpack.c.l.b16 %v204
      %v241 = vunpack.c.h.b16 %v204
      %v242 = vunpack.c.l.b16 %v205
      %v243 = vunpack.c.h.b16 %v205
      %v244 = vunpack.c.l.b16 %v206
      %v245 = vunpack.c.h.b16 %v206
      %v246 = vunpack.c.l.b16 %v207
      %v247 = vunpack.c.h.b16 %v207
      %v248 = vunpack.c.l.b16 %v208
      %v249 = vunpack.c.h.b16 %v208
      %v250 = vunpack.c.l.b16 %v209
      %v251 = vunpack.c.h.b16 %v209
      %v252 = vunpack.c.l.b16 %v210
      %v253 = vunpack.c.h.b16 %v210
      %v254 = vunpack.c.l.b16 %v211
      %v255 = vunpack.c.h.b16 %v211
      %v256 = vunpack.c.l.b16 %v212
      %v257 = vunpack.c.h.b16 %v212
      %v258 = vunpack.c.l.b16 %v213
      %v259 = vunpack.c.h.b16 %v213
      %v260 = vunpack.c.l.b16 %v214
      %v261 = vunpack.c.h.b16 %v214
      %v262 = vunpack.c.l.b16 %v215
      %v263 = vunpack.c.h.b16 %v215
      %v264 = vpack.c.b16 %v234, %v232
      %v265 = vpack.c.b16 %v235, %v233
      %v266 = vpack.c.b16 %v238, %v236
      %v267 = vpack.c.b16 %v239, %v237
      %v268 = vpack.c.b16 %v242, %v240
      %v269 = vpack.c.b16 %v243, %v241
      %v270 = vpack.c.b16 %v246, %v244
      %v271 = vpack.c.b16 %v247, %v245
      %v272 = vpack.c.b16 %v250, %v248
      %v273 = vpack.c.b16 %v251, %v249
      %v274 = vpack.c.b16 %v254, %v252
      %v275 = vpack.c.b16 %v255, %v253
      %v276 = vpack.c.b16 %v258, %v256
      %v277 = vpack.c.b16 %v259, %v257
      %v278 = vpack.c.b16 %v262, %v260
      %v279 = vpack.c.b16 %v263, %v261
      %296 = vmatprep.subr.bf16.mxu0 %v265
      %297 = vmatpush1.bf16.msra.mxu0 %v264
      %298 = vmatprep.subr.bf16.mxu0 %v267
      %299 = vmatpush1.bf16.msra.mxu0 %v266
      %300 = vmatprep.subr.bf16.mxu0 %v269
      %301 = vmatpush1.bf16.msra.mxu0 %v268
      %302 = vmatprep.subr.bf16.mxu0 %v271
      %303 = vmatpush1.bf16.msra.mxu0 %v270
      %304 = vmatprep.subr.bf16.mxu0 %v273
      %305 = vmatpush1.bf16.msra.mxu0 %v272
      %306 = vmatprep.subr.bf16.mxu0 %v275
      %307 = vmatpush1.bf16.msra.mxu0 %v274
      %308 = vmatprep.subr.bf16.mxu0 %v277
      %309 = vmatpush1.bf16.msra.mxu0 %v276
      %310 = vmatprep.subr.bf16.mxu0 %v279
      %311 = vmatpush1.bf16.msra.mxu0 %v278
      %312 = vmatprep.subr.bf16.mxu0 0
      %313 = vmatpush1.bf16.msra.mxu0 0
      %314 = vmatprep.subr.bf16.mxu0 0
      %315 = vmatpush1.bf16.msra.mxu0 0
      %316 = vmatprep.subr.bf16.mxu0 0
      %317 = vmatpush1.bf16.msra.mxu0 0
      %318 = vmatprep.subr.bf16.mxu0 0
      %319 = vmatpush1.bf16.msra.mxu0 0
      %320 = vmatprep.subr.bf16.mxu0 0
      %321 = vmatpush1.bf16.msra.mxu0 0
      %322 = vmatprep.subr.bf16.mxu0 0
      %323 = vmatpush1.bf16.msra.mxu0 0
      %324 = vmatprep.subr.bf16.mxu0 0
      %325 = vmatpush1.bf16.msra.mxu0 0
      %326 = vmatprep.subr.bf16.mxu0 0
      %327 = vmatpush1.bf16.msra.mxu0 0
      %328 = vmatprep.mubr.bf16.mxu0 0
      %329 = vmatmul.mubr.bf16.gmra.mrb[0].mxu0 %v199
      %v330 = vpop.f32.mrb[0].mxu0
      %v331 = vadd.f32 0.0, %v330
      %v332 = vpop.f32.mrb[0].mxu0
      %v333 = vadd.f32 0.0, %v332
      %v334 = vpop.f32.mrb[0].mxu0
      %v335 = vpop.f32.mrb[0].mxu0
      %336 = vdwg.mxu0
      %v337 = vadd.f32 %v331, %v333
      %338 = vadd.xlane.f32.xlu0 %v337
      %v339 = vpop.xlane.xlu0 %338
      %v340 = vrcp.pop 256.0
      %v341 = vmul.f32 %v339, %v340
      %v342 = vsub.f32 %v331, %v341
      %v343 = vsub.f32 %v333, %v341
      %v344 = vmul.f32 %v342, %v342
      %v345 = vmul.f32 %v343, %v343
      %v346 = vadd.f32 %v344, %v345
      %347 = vadd.xlane.f32.xlu0 %v346
      %v348 = vpop.xlane.xlu0 %347
      %v349 = vmul.f32 %v348, %v340
      %v350 = vadd.f32 %v349, 1e-05
      %v351 = vrsqrt.pop %v350
      %v352 = vmul.f32 %v342, %v351
      %v353 = vmul.f32 %v343, %v351
      %v354 = vld [vmem:[%s2] sm:$0xff]
      %356 = vset.pattern.permute.xlu0 0
      %357 = vperm.xlu0 %356, %v354
      %v358 = vpop.permute.xlu0 %357
      %v360 = vmul.f32 %v352, %v358
      %v361 = vmul.f32 %v353, %v358
      %v362 = vld [vmem:[%s3] sm:$0xff]
      %364 = vset.pattern.permute.xlu0 0
      %365 = vperm.xlu0 %364, %v362
      %v366 = vpop.permute.xlu0 %365
      %v368 = vadd.f32 %v360, %v366
      %v369 = vadd.f32 %v361, %v366
      %vm370 = vcmp.gt.f32.partialorder %v368, 0.0
      %vm371 = vcmp.gt.f32.partialorder %v369, 0.0
      %v372 = vmul.f32 %v368, 0.2
      %v373 = vmul.f32 %v369, 0.2
      %v374 = vsel %vm370, %v368, %v372
      %v375 = vsel %vm371, %v369, %v373
      %v376 = vpack.c.bf16 %v374, %v374
      %v377 = vpack.c.bf16 %v375, %v375
      %v380 = vunpack.c.l.b16 %v376
      %v381 = vunpack.c.l.b16 %v377
      %v382 = vpack.c.b16 %v381, %v380
      %384 = vst [vmem:[%s197] sm:$0xff] %v382
      %p385 = scmp.lt.s32.totalorder %s15, 1
      %s386 = scalar_select %p385, %s15, 1
      %s387 = smul.addr %s386, 2
      %s388 = smul.addr %s387, 4
      %s389 = scalar_lea.vmem %s4, %s388
      // Predicated region
      $region37: #{wgan_discriminator.5} parent=35 // pred_check
        %p390 = pneg %p122
      $region38: #{wgan_discriminator.5} parent=35 // pred_check_branch
        %392 = sbr.rel (%p390) target = $region40
      $region39: #{wgan_discriminator.5} parent=35 // pred_region
        _
      $region40: #{wgan_discriminator.5} parent=35 // pred_fallthru
        _
    $region36: #{wgan_discriminator.5} parent=5 // pred_fallthru
      _
    %p393 = scmp.le.s32.totalorder 2, %s10
    // Predicated region
    $region41: #{wgan_discriminator.5} parent=5 // pred_check
      %p394 = pneg %p393
    $region42: #{wgan_discriminator.5} parent=5 // pred_check_branch
      %396 = sbr.rel (%p394) target = $region44
    $region43: #{wgan_discriminator.5} parent=5 // pred_region
      %s397 = ssub.s32 %s10, 2
      // Predicated region
      $region45: #{wgan_discriminator.5} parent=43 // pred_check
        %p398 = pneg %p128
      $region46: #{wgan_discriminator.5} parent=43 // pred_check_branch
        %400 = sbr.rel (%p398) target = $region48
      $region47: #{wgan_discriminator.5} parent=43 // pred_region
        %p401 = scmp.lt.s32.totalorder %s16, 1
        %s402 = scalar_select %p401, %s16, 1
        %s403 = smul.addr %s402, 2
        %s404 = smul.addr %s403, 4
        %s405 = scalar_lea.vmem %s4, %s404
      $region48: #{wgan_discriminator.5} parent=43 // pred_fallthru
        _
    $region44: #{wgan_discriminator.5} parent=5 // pred_fallthru
      _
  $region6: #{wgan_discriminator.5} parent=0 // loop_footer
    %s14 = sadd.s32 1, %s10
  $region7: #{wgan_discriminator.5} parent=0 // loop_footer_branch
    %9 = sbr.rel target = $region3
  $region8: #{wgan_discriminator.5} parent=0 // loop_exit
    _

// kernel: wgan_discriminator.6
$region0: #{wgan_discriminator.6}
  #allocation0 [shape = 'u32[]', space=smem, size = 0x4, offset = 0x4, fixed_abs, tag = 'smem constant byte address 0x4 - core index']
  #allocation1 [shape = 'u32[144,128]{1,0:T(1,128)}', space=vmem, size = 0x12000, scoped, tag = 'internal scratch']
  %s0 = inlined_call_operand.vmem [shape: bf16[16,256], index: 0, kind: input, shape index: {}]
  %s1 = inlined_call_operand.vmem [shape: bf16[2,256,64], index: 1, kind: input, shape index: {}]
  %s2 = inlined_call_operand.vmem [shape: f32[16,1], index: 2, kind: input, shape index: {}]
  %s3 = inlined_call_operand.vmem [shape: f32[16,1], index: 3, kind: input, shape index: {}]
  %s4 = inlined_call_operand.vmem [shape: bf16[2,16,64], index: 4, kind: output, shape index: {}]
  %s5 = sld [smem:[#allocation0]]
  $region49: #{wgan_discriminator.6} parent=0
    _
  %s7 = ssub.s32 1, %s5
  %s8 = scalar_select 0, %s7, %s5
  loop: start=0, step=1, limit=4
  $region2: #{wgan_discriminator.6} parent=0 // loop_pre_header
    _
  $region3: #{wgan_discriminator.6} parent=0 // loop_header
    %s10 = sphi 0, %s14
    %p11 = scmp.ge.s32.totalorder %s10, 4
    %s18 = sphi 0, %s18
    %s20 = sphi 0, %s18
    %s21 = sphi 0, %s20
    %s35 = sphi 0, %s21
    %s41 = sphi 0, %s43
    %s44 = sphi 0, %s41
    %s45 = sphi 0, %s44
    %s61 = sphi 0, %s45
    %s65 = sphi 0, %s65
    %s67 = sphi 0, %s65
    %s68 = sphi 0, %s67
    %s82 = sphi 0, %s68
    %s86 = sphi 0, %s86
    %s88 = sphi 0, %s86
    %s89 = sphi 0, %s88
    %s103 = sphi 0, %s89
    %s109 = sphi 0, %s111
    %s112 = sphi 0, %s109
    %s113 = sphi 0, %s112
    %s129 = sphi 0, %s113
  $region4: #{wgan_discriminator.6} parent=0 // loop_header_branch
    %13 = sbr.rel (%p11) target = $region8
  $region5: #{wgan_discriminator.6} parent=0 // loop_body
    %s15 = ssub.s32 %s10, 1
    %s16 = ssub.s32 %s10, 2
    %s17 = sadd.s32 %s10, 1
    %s19 = sadd.s32 %s18, 1
    %p22 = scmp.eq.s32.totalorder %s10, 1
    %p23 = scmp.ne.s32.totalorder %s18, %s20
    %p24 = scmp.eq.s32.totalorder %s10, 0
    %p25 = por %p23, %p24
    %p26 = scmp.ne.s32.totalorder %s18, %s20
    %p27 = scmp.eq.s32.totalorder %s15, 1
    %p28 = por %p26, %p27
    %p29 = scmp.ne.s32.totalorder %s20, %s21
    %p30 = scmp.eq.s32.totalorder %s15, 0
    %p31 = por %p29, %p30
    %p32 = scmp.ne.s32.totalorder %s20, %s21
    %p33 = scmp.eq.s32.totalorder %s16, 1
    %p34 = por %p32, %p33
    %p36 = scmp.ne.s32.totalorder %s21, %s35
    %p37 = scmp.eq.s32.totalorder %s16, 0
    %p38 = por %p36, %p37
    %s39 = ssub.s32 %s10, %s17
    %p40 = scmp.eq.s32.totalorder %s39, 0
    %s42 = sadd.s32 %s41, 1
    %s43 = scalar_select %p40, %s41, %s42
    %p46 = pneg %p40
    %p47 = scmp.eq.s32.totalorder %s10, 1
    %p48 = por %p46, %p47
    %p49 = scmp.ne.s32.totalorder %s41, %s44
    %p50 = scmp.eq.s32.totalorder %s10, 0
    %p51 = por %p49, %p50
    %p52 = scmp.ne.s32.totalorder %s41, %s44
    %p53 = scmp.eq.s32.totalorder %s15, 1
    %p54 = por %p52, %p53
    %p55 = scmp.ne.s32.totalorder %s44, %s45
    %p56 = scmp.eq.s32.totalorder %s15, 0
    %p57 = por %p55, %p56
    %p58 = scmp.ne.s32.totalorder %s44, %s45
    %p59 = scmp.eq.s32.totalorder %s16, 1
    %p60 = por %p58, %p59
    %p62 = scmp.ne.s32.totalorder %s45, %s61
    %p63 = scmp.eq.s32.totalorder %s16, 0
    %p64 = por %p62, %p63
    %s66 = sadd.s32 %s65, 1
    %p69 = scmp.eq.s32.totalorder %s10, 1
    %p70 = scmp.ne.s32.totalorder %s65, %s67
    %p71 = scmp.eq.s32.totalorder %s10, 0
    %p72 = por %p70, %p71
    %p73 = scmp.ne.s32.totalorder %s65, %s67
    %p74 = scmp.eq.s32.totalorder %s15, 1
    %p75 = por %p73, %p74
    %p76 = scmp.ne.s32.totalorder %s67, %s68
    %p77 = scmp.eq.s32.totalorder %s15, 0
    %p78 = por %p76, %p77
    %p79 = scmp.ne.s32.totalorder %s67, %s68
    %p80 = scmp.eq.s32.totalorder %s16, 1
    %p81 = por %p79, %p80
    %p83 = scmp.ne.s32.totalorder %s68, %s82
    %p84 = scmp.eq.s32.totalorder %s16, 0
    %p85 = por %p83, %p84
    %s87 = sadd.s32 %s86, 1
    %p90 = scmp.eq.s32.totalorder %s10, 1
    %p91 = scmp.ne.s32.totalorder %s86, %s88
    %p92 = scmp.eq.s32.totalorder %s10, 0
    %p93 = por %p91, %p92
    %p94 = scmp.ne.s32.totalorder %s86, %s88
    %p95 = scmp.eq.s32.totalorder %s15, 1
    %p96 = por %p94, %p95
    %p97 = scmp.ne.s32.totalorder %s88, %s89
    %p98 = scmp.eq.s32.totalorder %s15, 0
    %p99 = por %p97, %p98
    %p100 = scmp.ne.s32.totalorder %s88, %s89
    %p101 = scmp.eq.s32.totalorder %s16, 1
    %p102 = por %p100, %p101
    %p104 = scmp.ne.s32.totalorder %s89, %s103
    %p105 = scmp.eq.s32.totalorder %s16, 0
    %p106 = por %p104, %p105
    %s107 = ssub.s32 %s10, %s17
    %p108 = scmp.eq.s32.totalorder %s107, 0
    %s110 = sadd.s32 %s109, 1
    %s111 = scalar_select %p108, %s109, %s110
    %p114 = pneg %p108
    %p115 = scmp.eq.s32.totalorder %s10, 1
    %p116 = por %p114, %p115
    %p117 = scmp.ne.s32.totalorder %s109, %s112
    %p118 = scmp.eq.s32.totalorder %s10, 0
    %p119 = por %p117, %p118
    %p120 = scmp.ne.s32.totalorder %s109, %s112
    %p121 = scmp.eq.s32.totalorder %s15, 1
    %p122 = por %p120, %p121
    %p123 = scmp.ne.s32.totalorder %s112, %s113
    %p124 = scmp.eq.s32.totalorder %s15, 0
    %p125 = por %p123, %p124
    %p126 = scmp.ne.s32.totalorder %s112, %s113
    %p127 = scmp.eq.s32.totalorder %s16, 1
    %p128 = por %p126, %p127
    %p130 = scmp.ne.s32.totalorder %s113, %s129
    %p131 = scmp.eq.s32.totalorder %s16, 0
    %p132 = por %p130, %p131
    %p133 = scmp.le.s32.totalorder 1, %s10
    %p134 = scmp.lt.s32.totalorder %s10, 3
    %p135 = pnand %p133, %p134
    %p136 = pneg %p135
    // Predicated region
    $region9: #{wgan_discriminator.6} parent=5 // pred_check
      _
    $region10: #{wgan_discriminator.6} parent=5 // pred_check_branch
      %138 = sbr.rel (%p135) target = $region12
    $region11: #{wgan_discriminator.6} parent=5 // pred_region
      %s139 = ssub.s32 %s10, 1
      // Predicated region
      $region13: #{wgan_discriminator.6} parent=11 // pred_check
        %p140 = pneg %p31
      $region14: #{wgan_discriminator.6} parent=11 // pred_check_branch
        %142 = sbr.rel (%p140) target = $region16
      $region15: #{wgan_discriminator.6} parent=11 // pred_region
        _
      $region16: #{wgan_discriminator.6} parent=11 // pred_fallthru
        _
      // Predicated region
      $region17: #{wgan_discriminator.6} parent=11 // pred_check
        %p143 = pneg %p78
      $region18: #{wgan_discriminator.6} parent=11 // pred_check_branch
        %145 = sbr.rel (%p143) target = $region20
      $region19: #{wgan_discriminator.6} parent=11 // pred_region
        _
      $region20: #{wgan_discriminator.6} parent=11 // pred_fallthru
        _
      // Predicated region
      $region21: #{wgan_discriminator.6} parent=11 // pred_check
        %p146 = pneg %p99
      $region22: #{wgan_discriminator.6} parent=11 // pred_check_branch
        %148 = sbr.rel (%p146) target = $region24
      $region23: #{wgan_discriminator.6} parent=11 // pred_region
        _
      $region24: #{wgan_discriminator.6} parent=11 // pred_fallthru
        _
    $region12: #{wgan_discriminator.6} parent=5 // pred_fallthru
      _
    %p149 = scmp.lt.s32.totalorder %s10, 2
    // Predicated region
    $region25: #{wgan_discriminator.6} parent=5 // pred_check
      %p150 = pneg %p149
    $region26: #{wgan_discriminator.6} parent=5 // pred_check_branch
      %152 = sbr.rel (%p150) target = $region28
    $region27: #{wgan_discriminator.6} parent=5 // pred_region
      // Predicated region
      $region29: #{wgan_discriminator.6} parent=27 // pred_check
        %p153 = pneg %p51
      $region30: #{wgan_discriminator.6} parent=27 // pred_check_branch
        %155 = sbr.rel (%p153) target = $region32
      $region31: #{wgan_discriminator.6} parent=27 // pred_region
        %p156 = scmp.lt.s32.totalorder %s10, 1
        %s157 = scalar_select %p156, %s10, 1
        %s158 = smul.addr %s157, 32
        %s159 = smul.addr %s158, 4
        %s160 = scalar_lea.vmem %s1, %s159
      $region32: #{wgan_discriminator.6} parent=27 // pred_fallthru
        _
    $region28: #{wgan_discriminator.6} parent=5 // pred_fallthru
      _
    %p161 = scmp.le.s32.totalorder 1, %s10
    %p162 = scmp.lt.s32.totalorder %s10, 3
    %p163 = pnand %p161, %p162
    %p164 = pneg %p163
    // Predicated region
    $region33: #{wgan_discriminator.6} parent=5 // pred_check
      _
    $region34: #{wgan_discriminator.6} parent=5 // pred_check_branch
      %166 = sbr.rel (%p163) target = $region36
    $region35: #{wgan_discriminator.6} parent=5 // pred_region
      %s167 = ssub.s32 %s10, 1
      %p168 = pneg %p31
      %p169 = pneg %p28
      %p170 = scmp.lt.s32.totalorder %s15, 1
      %s171 = scalar_select %p170, %s15, 1
      %s172 = smul.addr %s171, 32
      %s173 = smul.addr %s172, 4
      %s174 = scalar_lea.vmem %s1, %s173
      %p175 = pneg %p57
      %p176 = pneg %p54
      %p177 = pneg %p78
      %p178 = pneg %p75
      %p179 = pneg %p99
      %p180 = pneg %p96
      %p181 = pneg %p125
      %p182 = pneg %p122
      %p183 = scmp.lt.s32.totalorder %s15, 1
      %s184 = scalar_select %p183, %s15, 1
      %s185 = smul.addr %s184, 2
      %s186 = smul.addr %s185, 4
      %s187 = scalar_lea.vmem %s4, %s186
      %p188 = scmp.lt.s32.totalorder %s15, 1
      %s189 = scalar_select %p188, %s15, 1
      %s190 = smul.addr %s189, 32
      %s191 = smul.addr %s190, 4
      %s192 = scalar_lea.vmem %s1, %s191
      %p193 = scmp.lt.s32.totalorder %s15, 1
      %s194 = scalar_select %p193, %s15, 1
      %s195 = smul.addr %s194, 2
      %s196 = smul.addr %s195, 4
      %s197 = scalar_lea.vmem %s4, %s196
      %v199 = vld [vmem:[%s0] sm:$0xff]
      %v200 = vld [vmem:[%s0 + $0x8] sm:$0xff]
      %v201 = vld [vmem:[%s192] sm:$0xf]
      %v202 = vld [vmem:[%s192 + $0x4] sm:$0xf]
      %v203 = vld [vmem:[%s192 + $0x8] sm:$0xf]
      %v204 = vld [vmem:[%s192 + $0xc] sm:$0xf]
      %v205 = vld [vmem:[%s192 + $0x10] sm:$0xf]
      %v206 = vld [vmem:[%s192 + $0x14] sm:$0xf]
      %v207 = vld [vmem:[%s192 + $0x18] sm:$0xf]
      %v208 = vld [vmem:[%s192 + $0x1c] sm:$0xf]
      %v209 = vld [vmem:[%s192 + $0x20] sm:$0xf]
      %v210 = vld [vmem:[%s192 + $0x24] sm:$0xf]
      %v211 = vld [vmem:[%s192 + $0x28] sm:$0xf]
      %v212 = vld [vmem:[%s192 + $0x2c] sm:$0xf]
      %v213 = vld [vmem:[%s192 + $0x30] sm:$0xf]
      %v214 = vld [vmem:[%s192 + $0x34] sm:$0xf]
      %v215 = vld [vmem:[%s192 + $0x38] sm:$0xf]
      %v216 = vld [vmem:[%s192 + $0x3c] sm:$0xf]
      %v217 = vld [vmem:[%s192 + $0x40] sm:$0xf]
      %v218 = vld [vmem:[%s192 + $0x44] sm:$0xf]
      %v219 = vld [vmem:[%s192 + $0x48] sm:$0xf]
      %v220 = vld [vmem:[%s192 + $0x4c] sm:$0xf]
      %v221 = vld [vmem:[%s192 + $0x50] sm:$0xf]
      %v222 = vld [vmem:[%s192 + $0x54] sm:$0xf]
      %v223 = vld [vmem:[%s192 + $0x58] sm:$0xf]
      %v224 = vld [vmem:[%s192 + $0x5c] sm:$0xf]
      %v225 = vld [vmem:[%s192 + $0x60] sm:$0xf]
      %v226 = vld [vmem:[%s192 + $0x64] sm:$0xf]
      %v227 = vld [vmem:[%s192 + $0x68] sm:$0xf]
      %v228 = vld [vmem:[%s192 + $0x6c] sm:$0xf]
      %v229 = vld [vmem:[%s192 + $0x70] sm:$0xf]
      %v230 = vld [vmem:[%s192 + $0x74] sm:$0xf]
      %v231 = vld [vmem:[%s192 + $0x78] sm:$0xf]
      %v232 = vld [vmem:[%s192 + $0x7c] sm:$0xf]
      %v235 = vunpack.c.l.b16 %v199
      %v236 = vunpack.c.h.b16 %v199
      %v237 = vunpack.c.l.b16 %v200
      %v238 = vunpack.c.h.b16 %v200
      %v239 = vpack.c.b16 %v237, %v235
      %v240 = vpack.c.b16 %v238, %v236
      %v275 = vunpack.c.l.b16 %v201
      %v276 = vunpack.c.l.b16 %v202
      %v277 = vunpack.c.l.b16 %v203
      %v278 = vunpack.c.l.b16 %v204
      %v279 = vunpack.c.l.b16 %v205
      %v280 = vunpack.c.l.b16 %v206
      %v281 = vunpack.c.l.b16 %v207
      %v282 = vunpack.c.l.b16 %v208
      %v283 = vunpack.c.l.b16 %v209
      %v284 = vunpack.c.l.b16 %v210
      %v285 = vunpack.c.l.b16 %v211
      %v286 = vunpack.c.l.b16 %v212
      %v287 = vunpack.c.l.b16 %v213
      %v288 = vunpack.c.l.b16 %v214
      %v289 = vunpack.c.l.b16 %v215
      %v290 = vunpack.c.l.b16 %v216
      %v291 = vunpack.c.l.b16 %v217
      %v292 = vunpack.c.l.b16 %v218
      %v293 = vunpack.c.l.b16 %v219
      %v294 = vunpack.c.l.b16 %v220
      %v295 = vunpack.c.l.b16 %v221
      %v296 = vunpack.c.l.b16 %v222
      %v297 = vunpack.c.l.b16 %v223
      %v298 = vunpack.c.l.b16 %v224
      %v299 = vunpack.c.l.b16 %v225
      %v300 = vunpack.c.l.b16 %v226
      %v301 = vunpack.c.l.b16 %v227
      %v302 = vunpack.c.l.b16 %v228
      %v303 = vunpack.c.l.b16 %v229
      %v304 = vunpack.c.l.b16 %v230
      %v305 = vunpack.c.l.b16 %v231
      %v306 = vunpack.c.l.b16 %v232
      %v307 = vpack.c.b16 %v276, %v275
      %v308 = vpack.c.b16 %v278, %v277
      %v309 = vpack.c.b16 %v280, %v279
      %v310 = vpack.c.b16 %v282, %v281
      %v311 = vpack.c.b16 %v284, %v283
      %v312 = vpack.c.b16 %v286, %v285
      %v313 = vpack.c.b16 %v288, %v287
      %v314 = vpack.c.b16 %v290, %v289
      %v315 = vpack.c.b16 %v292, %v291
      %v316 = vpack.c.b16 %v294, %v293
      %v317 = vpack.c.b16 %v296, %v295
      %v318 = vpack.c.b16 %v298, %v297
      %v319 = vpack.c.b16 %v300, %v299
      %v320 = vpack.c.b16 %v302, %v301
      %v321 = vpack.c.b16 %v304, %v303
      %v322 = vpack.c.b16 %v306, %v305
      %339 = vmatprep.subr.bf16.mxu0 0
      %340 = vmatpush1.bf16.msra.mxu0 %v307
      %341 = vmatprep.subr.bf16.mxu0 0
      %342 = vmatpush1.bf16.msra.mxu0 %v308
      %343 = vmatprep.subr.bf16.mxu0 0
      %344 = vmatpush1.bf16.msra.mxu0 %v309
      %345 = vmatprep.subr.bf16.mxu0 0
      %346 = vmatpush1.bf16.msra.mxu0 %v310
      %347 = vmatprep.subr.bf16.mxu0 0
      %348 = vmatpush1.bf16.msra.mxu0 %v311
      %349 = vmatprep.subr.bf16.mxu0 0
      %350 = vmatpush1.bf16.msra.mxu0 %v312
      %351 = vmatprep.subr.bf16.mxu0 0
      %352 = vmatpush1.bf16.msra.mxu0 %v313
      %353 = vmatprep.subr.bf16.mxu0 0
      %354 = vmatpush1.bf16.msra.mxu0 %v314
      %355 = vmatprep.subr.bf16.mxu0 0
      %356 = vmatpush1.bf16.msra.mxu0 %v315
      %357 = vmatprep.subr.bf16.mxu0 0
      %358 = vmatpush1.bf16.msra.mxu0 %v316
      %359 = vmatprep.subr.bf16.mxu0 0
      %360 = vmatpush1.bf16.msra.mxu0 %v317
      %361 = vmatprep.subr.bf16.mxu0 0
      %362 = vmatpush1.bf16.msra.mxu0 %v318
      %363 = vmatprep.subr.bf16.mxu0 0
      %364 = vmatpush1.bf16.msra.mxu0 %v319
      %365 = vmatprep.subr.bf16.mxu0 0
      %366 = vmatpush1.bf16.msra.mxu0 %v320
      %367 = vmatprep.subr.bf16.mxu0 0
      %368 = vmatpush1.bf16.msra.mxu0 %v321
      %369 = vmatprep.subr.bf16.mxu0 0
      %370 = vmatpush1.bf16.msra.mxu0 %v322
      %371 = vmatprep.mubr.bf16.mxu0 %v240
      %372 = vmatmul.mubr.bf16.gmra.mrb[0].mxu0 %v239
      %v373 = vpop.f32.mrb[0].mxu0
      %v374 = vadd.f32 0.0, %v373
      %v375 = vpop.f32.mrb[0].mxu0
      %v376 = vpop.f32.mrb[0].mxu0
      %v377 = vadd.f32 0.0, %v376
      %v378 = vpop.f32.mrb[0].mxu0
      %379 = vdwg.mxu0
      %vm380 = vcmask 523264
      %v381 = vsel %vm380, %v374, 0.0
      %382 = vadd.xlane.f32.xlu0 %v381
      %v383 = vpop.xlane.xlu0 %382
      %v384 = vsel %vm380, %v377, 0.0
      %385 = vadd.xlane.f32.xlu0 %v384
      %v386 = vpop.xlane.xlu0 %385
      %v387 = vrcp.pop 64.0
      %v388 = vmul.f32 %v383, %v387
      %v389 = vmul.f32 %v386, %v387
      %v390 = vsub.f32 %v374, %v388
      %v391 = vsub.f32 %v377, %v389
      %v392 = vmul.f32 %v390, %v390
      %v393 = vmul.f32 %v391, %v391
      %v394 = vsel %vm380, %v392, 0.0
      %395 = vadd.xlane.f32.xlu0 %v394
      %v396 = vpop.xlane.xlu0 %395
      %v397 = vsel %vm380, %v393, 0.0
      %398 = vadd.xlane.f32.xlu0 %v397
      %v399 = vpop.xlane.xlu0 %398
      %v400 = vmul.f32 %v396, %v387
      %v401 = vmul.f32 %v399, %v387
      %v402 = vadd.f32 %v400, 1e-05
      %v403 = vadd.f32 %v401, 1e-05
      %v404 = vrsqrt.pop %v402
      %v405 = vrsqrt.pop %v403
      %v406 = vmul.f32 %v390, %v404
      %v407 = vmul.f32 %v391, %v405
      %v408 = vld [vmem:[%s2] sm:$0xff]
      %v409 = vld [vmem:[%s2 + $0x8] sm:$0xff]
      %411 = vset.pattern.permute.xlu0 0
      %412 = vperm.xlu0 %411, %v408
      %v413 = vpop.permute.xlu0 %412
      %416 = vset.pattern.permute.xlu0 0
      %417 = vperm.xlu0 %416, %v409
      %v418 = vpop.permute.xlu0 %417
      %v420 = vmul.f32 %v406, %v413
      %v421 = vmul.f32 %v407, %v418
      %v422 = vld [vmem:[%s3] sm:$0xff]
      %v423 = vld [vmem:[%s3 + $0x8] sm:$0xff]
      %425 = vset.pattern.permute.xlu0 0
      %426 = vperm.xlu0 %425, %v422
      %v427 = vpop.permute.xlu0 %426
      %430 = vset.pattern.permute.xlu0 0
      %431 = vperm.xlu0 %430, %v423
      %v432 = vpop.permute.xlu0 %431
      %v434 = vadd.f32 %v420, %v427
      %v435 = vadd.f32 %v421, %v432
      %vm436 = vcmp.gt.f32.partialorder %v434, 0.0
      %vm437 = vcmp.gt.f32.partialorder %v435, 0.0
      %v438 = vmul.f32 %v434, 0.2
      %v439 = vmul.f32 %v435, 0.2
      %v440 = vsel %vm436, %v434, %v438
      %v441 = vsel %vm437, %v435, %v439
      %v442 = vpack.c.bf16 %v441, %v440
      %v444 = vunpack.c.l.b16 %v442
      %v445 = vunpack.c.h.b16 %v442
      %v446 = vpack.c.b16 %v444, %v444
      %v447 = vpack.c.b16 %v445, %v445
      %vm450 = vcmask 519168
      %451 = vst.msk [vmem:[%s197] sm:$0xf] %vm450, %v446
      %452 = vst.msk [vmem:[%s197 + $0x4] sm:$0xf] %vm450, %v447
      %p453 = scmp.lt.s32.totalorder %s15, 1
      %s454 = scalar_select %p453, %s15, 1
      %s455 = smul.addr %s454, 2
      %s456 = smul.addr %s455, 4
      %s457 = scalar_lea.vmem %s4, %s456
      // Predicated region
      $region37: #{wgan_discriminator.6} parent=35 // pred_check
        %p458 = pneg %p122
      $region38: #{wgan_discriminator.6} parent=35 // pred_check_branch
        %460 = sbr.rel (%p458) target = $region40
      $region39: #{wgan_discriminator.6} parent=35 // pred_region
        _
      $region40: #{wgan_discriminator.6} parent=35 // pred_fallthru
        _
    $region36: #{wgan_discriminator.6} parent=5 // pred_fallthru
      _
    %p461 = scmp.le.s32.totalorder 2, %s10
    // Predicated region
    $region41: #{wgan_discriminator.6} parent=5 // pred_check
      %p462 = pneg %p461
    $region42: #{wgan_discriminator.6} parent=5 // pred_check_branch
      %464 = sbr.rel (%p462) target = $region44
    $region43: #{wgan_discriminator.6} parent=5 // pred_region
      %s465 = ssub.s32 %s10, 2
      // Predicated region
      $region45: #{wgan_discriminator.6} parent=43 // pred_check
        %p466 = pneg %p128
      $region46: #{wgan_discriminator.6} parent=43 // pred_check_branch
        %468 = sbr.rel (%p466) target = $region48
      $region47: #{wgan_discriminator.6} parent=43 // pred_region
        %p469 = scmp.lt.s32.totalorder %s16, 1
        %s470 = scalar_select %p469, %s16, 1
        %s471 = smul.addr %s470, 2
        %s472 = smul.addr %s471, 4
        %s473 = scalar_lea.vmem %s4, %s472
      $region48: #{wgan_discriminator.6} parent=43 // pred_fallthru
        _
    $region44: #{wgan_discriminator.6} parent=5 // pred_fallthru
      _
  $region6: #{wgan_discriminator.6} parent=0 // loop_footer
    %s14 = sadd.s32 1, %s10
  $region7: #{wgan_discriminator.6} parent=0 // loop_footer_branch
    %9 = sbr.rel target = $region3
  $region8: #{wgan_discriminator.6} parent=0 // loop_exit
    _

// kernel: wgan_discriminator.7
$region0: #{wgan_discriminator.7}
  #allocation0 [shape = 'u32[]', space=smem, size = 0x4, offset = 0x4, fixed_abs, tag = 'smem constant byte address 0x4 - core index']
  #allocation1 [shape = 'u32[144,128]{1,0:T(1,128)}', space=vmem, size = 0x12000, scoped, tag = 'internal scratch']
  %s0 = inlined_call_operand.vmem [shape: bf16[32,512], index: 0, kind: input, shape index: {}]
  %s1 = inlined_call_operand.vmem [shape: bf16[2,512,16], index: 1, kind: input, shape index: {}]
  %s2 = inlined_call_operand.vmem [shape: f32[32,1], index: 2, kind: input, shape index: {}]
  %s3 = inlined_call_operand.vmem [shape: f32[32,1], index: 3, kind: input, shape index: {}]
  %s4 = inlined_call_operand.vmem [shape: bf16[2,32,16], index: 4, kind: output, shape index: {}]
  %s5 = sld [smem:[#allocation0]]
  $region49: #{wgan_discriminator.7} parent=0
    _
  %s7 = ssub.s32 1, %s5
  %s8 = scalar_select 0, %s7, %s5
  loop: start=0, step=1, limit=4
  $region2: #{wgan_discriminator.7} parent=0 // loop_pre_header
    _
  $region3: #{wgan_discriminator.7} parent=0 // loop_header
    %s10 = sphi 0, %s14
    %p11 = scmp.ge.s32.totalorder %s10, 4
    %s18 = sphi 0, %s18
    %s20 = sphi 0, %s18
    %s21 = sphi 0, %s20
    %s35 = sphi 0, %s21
    %s41 = sphi 0, %s43
    %s44 = sphi 0, %s41
    %s45 = sphi 0, %s44
    %s61 = sphi 0, %s45
    %s65 = sphi 0, %s65
    %s67 = sphi 0, %s65
    %s68 = sphi 0, %s67
    %s82 = sphi 0, %s68
    %s86 = sphi 0, %s86
    %s88 = sphi 0, %s86
    %s89 = sphi 0, %s88
    %s103 = sphi 0, %s89
    %s109 = sphi 0, %s111
    %s112 = sphi 0, %s109
    %s113 = sphi 0, %s112
    %s129 = sphi 0, %s113
  $region4: #{wgan_discriminator.7} parent=0 // loop_header_branch
    %13 = sbr.rel (%p11) target = $region8
  $region5: #{wgan_discriminator.7} parent=0 // loop_body
    %s15 = ssub.s32 %s10, 1
    %s16 = ssub.s32 %s10, 2
    %s17 = sadd.s32 %s10, 1
    %s19 = sadd.s32 %s18, 1
    %p22 = scmp.eq.s32.totalorder %s10, 1
    %p23 = scmp.ne.s32.totalorder %s18, %s20
    %p24 = scmp.eq.s32.totalorder %s10, 0
    %p25 = por %p23, %p24
    %p26 = scmp.ne.s32.totalorder %s18, %s20
    %p27 = scmp.eq.s32.totalorder %s15, 1
    %p28 = por %p26, %p27
    %p29 = scmp.ne.s32.totalorder %s20, %s21
    %p30 = scmp.eq.s32.totalorder %s15, 0
    %p31 = por %p29, %p30
    %p32 = scmp.ne.s32.totalorder %s20, %s21
    %p33 = scmp.eq.s32.totalorder %s16, 1
    %p34 = por %p32, %p33
    %p36 = scmp.ne.s32.totalorder %s21, %s35
    %p37 = scmp.eq.s32.totalorder %s16, 0
    %p38 = por %p36, %p37
    %s39 = ssub.s32 %s10, %s17
    %p40 = scmp.eq.s32.totalorder %s39, 0
    %s42 = sadd.s32 %s41, 1
    %s43 = scalar_select %p40, %s41, %s42
    %p46 = pneg %p40
    %p47 = scmp.eq.s32.totalorder %s10, 1
    %p48 = por %p46, %p47
    %p49 = scmp.ne.s32.totalorder %s41, %s44
    %p50 = scmp.eq.s32.totalorder %s10, 0
    %p51 = por %p49, %p50
    %p52 = scmp.ne.s32.totalorder %s41, %s44
    %p53 = scmp.eq.s32.totalorder %s15, 1
    %p54 = por %p52, %p53
    %p55 = scmp.ne.s32.totalorder %s44, %s45
    %p56 = scmp.eq.s32.totalorder %s15, 0
    %p57 = por %p55, %p56
    %p58 = scmp.ne.s32.totalorder %s44, %s45
    %p59 = scmp.eq.s32.totalorder %s16, 1
    %p60 = por %p58, %p59
    %p62 = scmp.ne.s32.totalorder %s45, %s61
    %p63 = scmp.eq.s32.totalorder %s16, 0
    %p64 = por %p62, %p63
    %s66 = sadd.s32 %s65, 1
    %p69 = scmp.eq.s32.totalorder %s10, 1
    %p70 = scmp.ne.s32.totalorder %s65, %s67
    %p71 = scmp.eq.s32.totalorder %s10, 0
    %p72 = por %p70, %p71
    %p73 = scmp.ne.s32.totalorder %s65, %s67
    %p74 = scmp.eq.s32.totalorder %s15, 1
    %p75 = por %p73, %p74
    %p76 = scmp.ne.s32.totalorder %s67, %s68
    %p77 = scmp.eq.s32.totalorder %s15, 0
    %p78 = por %p76, %p77
    %p79 = scmp.ne.s32.totalorder %s67, %s68
    %p80 = scmp.eq.s32.totalorder %s16, 1
    %p81 = por %p79, %p80
    %p83 = scmp.ne.s32.totalorder %s68, %s82
    %p84 = scmp.eq.s32.totalorder %s16, 0
    %p85 = por %p83, %p84
    %s87 = sadd.s32 %s86, 1
    %p90 = scmp.eq.s32.totalorder %s10, 1
    %p91 = scmp.ne.s32.totalorder %s86, %s88
    %p92 = scmp.eq.s32.totalorder %s10, 0
    %p93 = por %p91, %p92
    %p94 = scmp.ne.s32.totalorder %s86, %s88
    %p95 = scmp.eq.s32.totalorder %s15, 1
    %p96 = por %p94, %p95
    %p97 = scmp.ne.s32.totalorder %s88, %s89
    %p98 = scmp.eq.s32.totalorder %s15, 0
    %p99 = por %p97, %p98
    %p100 = scmp.ne.s32.totalorder %s88, %s89
    %p101 = scmp.eq.s32.totalorder %s16, 1
    %p102 = por %p100, %p101
    %p104 = scmp.ne.s32.totalorder %s89, %s103
    %p105 = scmp.eq.s32.totalorder %s16, 0
    %p106 = por %p104, %p105
    %s107 = ssub.s32 %s10, %s17
    %p108 = scmp.eq.s32.totalorder %s107, 0
    %s110 = sadd.s32 %s109, 1
    %s111 = scalar_select %p108, %s109, %s110
    %p114 = pneg %p108
    %p115 = scmp.eq.s32.totalorder %s10, 1
    %p116 = por %p114, %p115
    %p117 = scmp.ne.s32.totalorder %s109, %s112
    %p118 = scmp.eq.s32.totalorder %s10, 0
    %p119 = por %p117, %p118
    %p120 = scmp.ne.s32.totalorder %s109, %s112
    %p121 = scmp.eq.s32.totalorder %s15, 1
    %p122 = por %p120, %p121
    %p123 = scmp.ne.s32.totalorder %s112, %s113
    %p124 = scmp.eq.s32.totalorder %s15, 0
    %p125 = por %p123, %p124
    %p126 = scmp.ne.s32.totalorder %s112, %s113
    %p127 = scmp.eq.s32.totalorder %s16, 1
    %p128 = por %p126, %p127
    %p130 = scmp.ne.s32.totalorder %s113, %s129
    %p131 = scmp.eq.s32.totalorder %s16, 0
    %p132 = por %p130, %p131
    %p133 = scmp.le.s32.totalorder 1, %s10
    %p134 = scmp.lt.s32.totalorder %s10, 3
    %p135 = pnand %p133, %p134
    %p136 = pneg %p135
    // Predicated region
    $region9: #{wgan_discriminator.7} parent=5 // pred_check
      _
    $region10: #{wgan_discriminator.7} parent=5 // pred_check_branch
      %138 = sbr.rel (%p135) target = $region12
    $region11: #{wgan_discriminator.7} parent=5 // pred_region
      %s139 = ssub.s32 %s10, 1
      // Predicated region
      $region13: #{wgan_discriminator.7} parent=11 // pred_check
        %p140 = pneg %p31
      $region14: #{wgan_discriminator.7} parent=11 // pred_check_branch
        %142 = sbr.rel (%p140) target = $region16
      $region15: #{wgan_discriminator.7} parent=11 // pred_region
        _
      $region16: #{wgan_discriminator.7} parent=11 // pred_fallthru
        _
      // Predicated region
      $region17: #{wgan_discriminator.7} parent=11 // pred_check
        %p143 = pneg %p78
      $region18: #{wgan_discriminator.7} parent=11 // pred_check_branch
        %145 = sbr.rel (%p143) target = $region20
      $region19: #{wgan_discriminator.7} parent=11 // pred_region
        _
      $region20: #{wgan_discriminator.7} parent=11 // pred_fallthru
        _
      // Predicated region
      $region21: #{wgan_discriminator.7} parent=11 // pred_check
        %p146 = pneg %p99
      $region22: #{wgan_discriminator.7} parent=11 // pred_check_branch
        %148 = sbr.rel (%p146) target = $region24
      $region23: #{wgan_discriminator.7} parent=11 // pred_region
        _
      $region24: #{wgan_discriminator.7} parent=11 // pred_fallthru
        _
    $region12: #{wgan_discriminator.7} parent=5 // pred_fallthru
      _
    %p149 = scmp.lt.s32.totalorder %s10, 2
    // Predicated region
    $region25: #{wgan_discriminator.7} parent=5 // pred_check
      %p150 = pneg %p149
    $region26: #{wgan_discriminator.7} parent=5 // pred_check_branch
      %152 = sbr.rel (%p150) target = $region28
    $region27: #{wgan_discriminator.7} parent=5 // pred_region
      // Predicated region
      $region29: #{wgan_discriminator.7} parent=27 // pred_check
        %p153 = pneg %p51
      $region30: #{wgan_discriminator.7} parent=27 // pred_check_branch
        %155 = sbr.rel (%p153) target = $region32
      $region31: #{wgan_discriminator.7} parent=27 // pred_region
        %p156 = scmp.lt.s32.totalorder %s10, 1
        %s157 = scalar_select %p156, %s10, 1
        %s158 = smul.addr %s157, 64
        %s159 = smul.addr %s158, 4
        %s160 = scalar_lea.vmem %s1, %s159
      $region32: #{wgan_discriminator.7} parent=27 // pred_fallthru
        _
    $region28: #{wgan_discriminator.7} parent=5 // pred_fallthru
      _
    %p161 = scmp.le.s32.totalorder 1, %s10
    %p162 = scmp.lt.s32.totalorder %s10, 3
    %p163 = pnand %p161, %p162
    %p164 = pneg %p163
    // Predicated region
    $region33: #{wgan_discriminator.7} parent=5 // pred_check
      _
    $region34: #{wgan_discriminator.7} parent=5 // pred_check_branch
      %166 = sbr.rel (%p163) target = $region36
    $region35: #{wgan_discriminator.7} parent=5 // pred_region
      %s167 = ssub.s32 %s10, 1
      %p168 = pneg %p31
      %p169 = pneg %p28
      %p170 = scmp.lt.s32.totalorder %s15, 1
      %s171 = scalar_select %p170, %s15, 1
      %s172 = smul.addr %s171, 64
      %s173 = smul.addr %s172, 4
      %s174 = scalar_lea.vmem %s1, %s173
      %p175 = pneg %p57
      %p176 = pneg %p54
      %p177 = pneg %p78
      %p178 = pneg %p75
      %p179 = pneg %p99
      %p180 = pneg %p96
      %p181 = pneg %p125
      %p182 = pneg %p122
      %p183 = scmp.lt.s32.totalorder %s15, 1
      %s184 = scalar_select %p183, %s15, 1
      %s185 = smul.addr %s184, 4
      %s186 = smul.addr %s185, 4
      %s187 = scalar_lea.vmem %s4, %s186
      %p188 = scmp.lt.s32.totalorder %s15, 1
      %s189 = scalar_select %p188, %s15, 1
      %s190 = smul.addr %s189, 64
      %s191 = smul.addr %s190, 4
      %s192 = scalar_lea.vmem %s1, %s191
      %p193 = scmp.lt.s32.totalorder %s15, 1
      %s194 = scalar_select %p193, %s15, 1
      %s195 = smul.addr %s194, 4
      %s196 = smul.addr %s195, 4
      %s197 = scalar_lea.vmem %s4, %s196
      %v199 = vld [vmem:[%s0] sm:$0xff]
      %v200 = vld [vmem:[%s0 + $0x8] sm:$0xff]
      %v201 = vld [vmem:[%s0 + $0x10] sm:$0xff]
      %v202 = vld [vmem:[%s0 + $0x18] sm:$0xff]
      %v203 = vld [vmem:[%s0 + $0x20] sm:$0xff]
      %v204 = vld [vmem:[%s0 + $0x28] sm:$0xff]
      %v205 = vld [vmem:[%s0 + $0x30] sm:$0xff]
      %v206 = vld [vmem:[%s0 + $0x38] sm:$0xff]
      %v207 = vld [vmem:[%s192] sm:$0xf]
      %v208 = vld [vmem:[%s192 + $0x4] sm:$0xf]
      %v209 = vld [vmem:[%s192 + $0x8] sm:$0xf]
      %v210 = vld [vmem:[%s192 + $0xc] sm:$0xf]
      %v211 = vld [vmem:[%s192 + $0x10] sm:$0xf]
      %v212 = vld [vmem:[%s192 + $0x14] sm:$0xf]
      %v213 = vld [vmem:[%s192 + $0x18] sm:$0xf]
      %v214 = vld [vmem:[%s192 + $0x1c] sm:$0xf]
      %v215 = vld [vmem:[%s192 + $0x20] sm:$0xf]
      %v216 = vld [vmem:[%s192 + $0x24] sm:$0xf]
      %v217 = vld [vmem:[%s192 + $0x28] sm:$0xf]
      %v218 = vld [vmem:[%s192 + $0x2c] sm:$0xf]
      %v219 = vld [vmem:[%s192 + $0x30] sm:$0xf]
      %v220 = vld [vmem:[%s192 + $0x34] sm:$0xf]
      %v221 = vld [vmem:[%s192 + $0x38] sm:$0xf]
      %v222 = vld [vmem:[%s192 + $0x3c] sm:$0xf]
      %v223 = vld [vmem:[%s192 + $0x40] sm:$0xf]
      %v224 = vld [vmem:[%s192 + $0x44] sm:$0xf]
      %v225 = vld [vmem:[%s192 + $0x48] sm:$0xf]
      %v226 = vld [vmem:[%s192 + $0x4c] sm:$0xf]
      %v227 = vld [vmem:[%s192 + $0x50] sm:$0xf]
      %v228 = vld [vmem:[%s192 + $0x54] sm:$0xf]
      %v229 = vld [vmem:[%s192 + $0x58] sm:$0xf]
      %v230 = vld [vmem:[%s192 + $0x5c] sm:$0xf]
      %v231 = vld [vmem:[%s192 + $0x60] sm:$0xf]
      %v232 = vld [vmem:[%s192 + $0x64] sm:$0xf]
      %v233 = vld [vmem:[%s192 + $0x68] sm:$0xf]
      %v234 = vld [vmem:[%s192 + $0x6c] sm:$0xf]
      %v235 = vld [vmem:[%s192 + $0x70] sm:$0xf]
      %v236 = vld [vmem:[%s192 + $0x74] sm:$0xf]
      %v237 = vld [vmem:[%s192 + $0x78] sm:$0xf]
      %v238 = vld [vmem:[%s192 + $0x7c] sm:$0xf]
      %v239 = vld [vmem:[%s192 + $0x80] sm:$0xf]
      %v240 = vld [vmem:[%s192 + $0x84] sm:$0xf]
      %v241 = vld [vmem:[%s192 + $0x88] sm:$0xf]
      %v242 = vld [vmem:[%s192 + $0x8c] sm:$0xf]
      %v243 = vld [vmem:[%s192 + $0x90] sm:$0xf]
      %v244 = vld [vmem:[%s192 + $0x94] sm:$0xf]
      %v245 = vld [vmem:[%s192 + $0x98] sm:$0xf]
      %v246 = vld [vmem:[%s192 + $0x9c] sm:$0xf]
      %v247 = vld [vmem:[%s192 + $0xa0] sm:$0xf]
      %v248 = vld [vmem:[%s192 + $0xa4] sm:$0xf]
      %v249 = vld [vmem:[%s192 + $0xa8] sm:$0xf]
      %v250 = vld [vmem:[%s192 + $0xac] sm:$0xf]
      %v251 = vld [vmem:[%s192 + $0xb0] sm:$0xf]
      %v252 = vld [vmem:[%s192 + $0xb4] sm:$0xf]
      %v253 = vld [vmem:[%s192 + $0xb8] sm:$0xf]
      %v254 = vld [vmem:[%s192 + $0xbc] sm:$0xf]
      %v255 = vld [vmem:[%s192 + $0xc0] sm:$0xf]
      %v256 = vld [vmem:[%s192 + $0xc4] sm:$0xf]
      %v257 = vld [vmem:[%s192 + $0xc8] sm:$0xf]
      %v258 = vld [vmem:[%s192 + $0xcc] sm:$0xf]
      %v259 = vld [vmem:[%s192 + $0xd0] sm:$0xf]
      %v260 = vld [vmem:[%s192 + $0xd4] sm:$0xf]
      %v261 = vld [vmem:[%s192 + $0xd8] sm:$0xf]
      %v262 = vld [vmem:[%s192 + $0xdc] sm:$0xf]
      %v263 = vld [vmem:[%s192 + $0xe0] sm:$0xf]
      %v264 = vld [vmem:[%s192 + $0xe4] sm:$0xf]
      %v265 = vld [vmem:[%s192 + $0xe8] sm:$0xf]
      %v266 = vld [vmem:[%s192 + $0xec] sm:$0xf]
      %v267 = vld [vmem:[%s192 + $0xf0] sm:$0xf]
      %v268 = vld [vmem:[%s192 + $0xf4] sm:$0xf]
      %v269 = vld [vmem:[%s192 + $0xf8] sm:$0xf]
      %v270 = vld [vmem:[%s192 + $0xfc] sm:$0xf]
      %v279 = vunpack.c.l.b16 %v199
      %v280 = vunpack.c.h.b16 %v199
      %v281 = vunpack.c.l.b16 %v200
      %v282 = vunpack.c.h.b16 %v200
      %v283 = vunpack.c.l.b16 %v201
      %v284 = vunpack.c.h.b16 %v201
      %v285 = vunpack.c.l.b16 %v202
      %v286 = vunpack.c.h.b16 %v202
      %v287 = vunpack.c.l.b16 %v203
      %v288 = vunpack.c.h.b16 %v203
      %v289 = vunpack.c.l.b16 %v204
      %v290 = vunpack.c.h.b16 %v204
      %v291 = vunpack.c.l.b16 %v205
      %v292 = vunpack.c.h.b16 %v205
      %v293 = vunpack.c.l.b16 %v206
      %v294 = vunpack.c.h.b16 %v206
      %v295 = vpack.c.b16 %v283, %v279
      %v296 = vpack.c.b16 %v284, %v280
      %v297 = vpack.c.b16 %v285, %v281
      %v298 = vpack.c.b16 %v286, %v282
      %v299 = vpack.c.b16 %v291, %v287
      %v300 = vpack.c.b16 %v292, %v288
      %v301 = vpack.c.b16 %v293, %v289
      %v302 = vpack.c.b16 %v294, %v290
      %v375 = vunpack.c.l.b16 %v207
      %v376 = vunpack.c.l.b16 %v208
      %v377 = vunpack.c.l.b16 %v209
      %v378 = vunpack.c.l.b16 %v210
      %v379 = vunpack.c.l.b16 %v211
      %v380 = vunpack.c.l.b16 %v212
      %v381 = vunpack.c.l.b16 %v213
      %v382 = vunpack.c.l.b16 %v214
      %v383 = vunpack.c.l.b16 %v215
      %v384 = vunpack.c.l.b16 %v216
      %v385 = vunpack.c.l.b16 %v217
      %v386 = vunpack.c.l.b16 %v218
      %v387 = vunpack.c.l.b16 %v219
      %v388 = vunpack.c.l.b16 %v220
      %v389 = vunpack.c.l.b16 %v221
      %v390 = vunpack.c.l.b16 %v222
      %v391 = vunpack.c.l.b16 %v223
      %v392 = vunpack.c.l.b16 %v224
      %v393 = vunpack.c.l.b16 %v225
      %v394 = vunpack.c.l.b16 %v226
      %v395 = vunpack.c.l.b16 %v227
      %v396 = vunpack.c.l.b16 %v228
      %v397 = vunpack.c.l.b16 %v229
      %v398 = vunpack.c.l.b16 %v230
      %v399 = vunpack.c.l.b16 %v231
      %v400 = vunpack.c.l.b16 %v232
      %v401 = vunpack.c.l.b16 %v233
      %v402 = vunpack.c.l.b16 %v234
      %v403 = vunpack.c.l.b16 %v235
      %v404 = vunpack.c.l.b16 %v236
      %v405 = vunpack.c.l.b16 %v237
      %v406 = vunpack.c.l.b16 %v238
      %v407 = vunpack.c.l.b16 %v239
      %v408 = vunpack.c.l.b16 %v240
      %v409 = vunpack.c.l.b16 %v241
      %v410 = vunpack.c.l.b16 %v242
      %v411 = vunpack.c.l.b16 %v243
      %v412 = vunpack.c.l.b16 %v244
      %v413 = vunpack.c.l.b16 %v245
      %v414 = vunpack.c.l.b16 %v246
      %v415 = vunpack.c.l.b16 %v247
      %v416 = vunpack.c.l.b16 %v248
      %v417 = vunpack.c.l.b16 %v249
      %v418 = vunpack.c.l.b16 %v250
      %v419 = vunpack.c.l.b16 %v251
      %v420 = vunpack.c.l.b16 %v252
      %v421 = vunpack.c.l.b16 %v253
      %v422 = vunpack.c.l.b16 %v254
      %v423 = vunpack.c.l.b16 %v255
      %v424 = vunpack.c.l.b16 %v256
      %v425 = vunpack.c.l.b16 %v257
      %v426 = vunpack.c.l.b16 %v258
      %v427 = vunpack.c.l.b16 %v259
      %v428 = vunpack.c.l.b16 %v260
      %v429 = vunpack.c.l.b16 %v261
      %v430 = vunpack.c.l.b16 %v262
      %v431 = vunpack.c.l.b16 %v263
      %v432 = vunpack.c.l.b16 %v264
      %v433 = vunpack.c.l.b16 %v265
      %v434 = vunpack.c.l.b16 %v266
      %v435 = vunpack.c.l.b16 %v267
      %v436 = vunpack.c.l.b16 %v268
      %v437 = vunpack.c.l.b16 %v269
      %v438 = vunpack.c.l.b16 %v270
      %v439 = vpack.c.b16 %v376, %v375
      %v440 = vpack.c.b16 %v378, %v377
      %v441 = vpack.c.b16 %v380, %v379
      %v442 = vpack.c.b16 %v382, %v381
      %v443 = vpack.c.b16 %v384, %v383
      %v444 = vpack.c.b16 %v386, %v385
      %v445 = vpack.c.b16 %v388, %v387
      %v446 = vpack.c.b16 %v390, %v389
      %v447 = vpack.c.b16 %v392, %v391
      %v448 = vpack.c.b16 %v394, %v393
      %v449 = vpack.c.b16 %v396, %v395
      %v450 = vpack.c.b16 %v398, %v397
      %v451 = vpack.c.b16 %v400, %v399
      %v452 = vpack.c.b16 %v402, %v401
      %v453 = vpack.c.b16 %v404, %v403
      %v454 = vpack.c.b16 %v406, %v405
      %v455 = vpack.c.b16 %v408, %v407
      %v456 = vpack.c.b16 %v410, %v409
      %v457 = vpack.c.b16 %v412, %v411
      %v458 = vpack.c.b16 %v414, %v413
      %v459 = vpack.c.b16 %v416, %v415
      %v460 = vpack.c.b16 %v418, %v417
      %v461 = vpack.c.b16 %v420, %v419
      %v462 = vpack.c.b16 %v422, %v421
      %v463 = vpack.c.b16 %v424, %v423
      %v464 = vpack.c.b16 %v426, %v425
      %v465 = vpack.c.b16 %v428, %v427
      %v466 = vpack.c.b16 %v430, %v429
      %v467 = vpack.c.b16 %v432, %v431
      %v468 = vpack.c.b16 %v434, %v433
      %v469 = vpack.c.b16 %v436, %v435
      %v470 = vpack.c.b16 %v438, %v437
      %503 = vmatprep.subr.bf16.mxu0 0
      %504 = vmatpush1.bf16.msra.mxu0 %v439
      %505 = vmatprep.subr.bf16.mxu0 0
      %506 = vmatpush1.bf16.msra.mxu0 %v440
      %507 = vmatprep.subr.bf16.mxu0 0
      %508 = vmatpush1.bf16.msra.mxu0 %v441
      %509 = vmatprep.subr.bf16.mxu0 0
      %510 = vmatpush1.bf16.msra.mxu0 %v442
      %511 = vmatprep.subr.bf16.mxu0 0
      %512 = vmatpush1.bf16.msra.mxu0 %v443
      %513 = vmatprep.subr.bf16.mxu0 0
      %514 = vmatpush1.bf16.msra.mxu0 %v444
      %515 = vmatprep.subr.bf16.mxu0 0
      %516 = vmatpush1.bf16.msra.mxu0 %v445
      %517 = vmatprep.subr.bf16.mxu0 0
      %518 = vmatpush1.bf16.msra.mxu0 %v446
      %519 = vmatprep.subr.bf16.mxu0 0
      %520 = vmatpush1.bf16.msra.mxu0 %v447
      %521 = vmatprep.subr.bf16.mxu0 0
      %522 = vmatpush1.bf16.msra.mxu0 %v448
      %523 = vmatprep.subr.bf16.mxu0 0
      %524 = vmatpush1.bf16.msra.mxu0 %v449
      %525 = vmatprep.subr.bf16.mxu0 0
      %526 = vmatpush1.bf16.msra.mxu0 %v450
      %527 = vmatprep.subr.bf16.mxu0 0
      %528 = vmatpush1.bf16.msra.mxu0 %v451
      %529 = vmatprep.subr.bf16.mxu0 0
      %530 = vmatpush1.bf16.msra.mxu0 %v452
      %531 = vmatprep.subr.bf16.mxu0 0
      %532 = vmatpush1.bf16.msra.mxu0 %v453
      %533 = vmatprep.subr.bf16.mxu0 0
      %534 = vmatpush1.bf16.msra.mxu0 %v454
      %535 = vmatprep.mubr.bf16.mxu0 %v296
      %536 = vmatmul.mubr.bf16.gmra.mrb[0].mxu0 %v295
      %v537 = vpop.f32.mrb[0].mxu0
      %v538 = vadd.f32 0.0, %v537
      %v539 = vpop.f32.mrb[0].mxu0
      %v540 = vpop.f32.mrb[0].mxu0
      %v541 = vadd.f32 0.0, %v540
      %v542 = vpop.f32.mrb[0].mxu0
      %543 = vmatprep.mubr.bf16.mxu0 %v300
      %544 = vmatmul.mubr.bf16.gmra.mrb[0].mxu0 %v299
      %v545 = vpop.f32.mrb[0].mxu0
      %v546 = vadd.f32 0.0, %v545
      %v547 = vpop.f32.mrb[0].mxu0
      %v548 = vpop.f32.mrb[0].mxu0
      %v549 = vadd.f32 0.0, %v548
      %v550 = vpop.f32.mrb[0].mxu0
      %551 = vdwg.mxu0
      %552 = vmatprep.subr.bf16.mxu0 0
      %553 = vmatpush1.bf16.msra.mxu0 %v455
      %554 = vmatprep.subr.bf16.mxu0 0
      %555 = vmatpush1.bf16.msra.mxu0 %v456
      %556 = vmatprep.subr.bf16.mxu0 0
      %557 = vmatpush1.bf16.msra.mxu0 %v457
      %558 = vmatprep.subr.bf16.mxu0 0
      %559 = vmatpush1.bf16.msra.mxu0 %v458
      %560 = vmatprep.subr.bf16.mxu0 0
      %561 = vmatpush1.bf16.msra.mxu0 %v459
      %562 = vmatprep.subr.bf16.mxu0 0
      %563 = vmatpush1.bf16.msra.mxu0 %v460
      %564 = vmatprep.subr.bf16.mxu0 0
      %565 = vmatpush1.bf16.msra.mxu0 %v461
      %566 = vmatprep.subr.bf16.mxu0 0
      %567 = vmatpush1.bf16.msra.mxu0 %v462
      %568 = vmatprep.subr.bf16.mxu0 0
      %569 = vmatpush1.bf16.msra.mxu0 %v463
      %570 = vmatprep.subr.bf16.mxu0 0
      %571 = vmatpush1.bf16.msra.mxu0 %v464
      %572 = vmatprep.subr.bf16.mxu0 0
      %573 = vmatpush1.bf16.msra.mxu0 %v465
      %574 = vmatprep.subr.bf16.mxu0 0
      %575 = vmatpush1.bf16.msra.mxu0 %v466
      %576 = vmatprep.subr.bf16.mxu0 0
      %577 = vmatpush1.bf16.msra.mxu0 %v467
      %578 = vmatprep.subr.bf16.mxu0 0
      %579 = vmatpush1.bf16.msra.mxu0 %v468
      %580 = vmatprep.subr.bf16.mxu0 0
      %581 = vmatpush1.bf16.msra.mxu0 %v469
      %582 = vmatprep.subr.bf16.mxu0 0
      %583 = vmatpush1.bf16.msra.mxu0 %v470
      %584 = vmatprep.mubr.bf16.mxu0 %v298
      %585 = vmatmul.mubr.bf16.gmra.mrb[0].mxu0 %v297
      %v586 = vpop.f32.mrb[0].mxu0
      %v587 = vadd.f32 %v538, %v586
      %v588 = vpop.f32.mrb[0].mxu0
      %v589 = vpop.f32.mrb[0].mxu0
      %v590 = vadd.f32 %v541, %v589
      %v591 = vpop.f32.mrb[0].mxu0
      %592 = vmatprep.mubr.bf16.mxu0 %v302
      %593 = vmatmul.mubr.bf16.gmra.mrb[0].mxu0 %v301
      %v594 = vpop.f32.mrb[0].mxu0
      %v595 = vadd.f32 %v546, %v594
      %v596 = vpop.f32.mrb[0].mxu0
      %v597 = vpop.f32.mrb[0].mxu0
      %v598 = vadd.f32 %v549, %v597
      %v599 = vpop.f32.mrb[0].mxu0
      %600 = vdwg.mxu0
      %vm601 = vcmask 130048
      %v602 = vsel %vm601, %v587, 0.0
      %603 = vadd.xlane.f32.xlu0 %v602
      %v604 = vpop.xlane.xlu0 %603
      %v605 = vsel %vm601, %v590, 0.0
      %606 = vadd.xlane.f32.xlu0 %v605
      %v607 = vpop.xlane.xlu0 %606
      %v608 = vsel %vm601, %v595, 0.0
      %609 = vadd.xlane.f32.xlu0 %v608
      %v610 = vpop.xlane.xlu0 %609
      %v611 = vsel %vm601, %v598, 0.0
      %612 = vadd.xlane.f32.xlu0 %v611
      %v613 = vpop.xlane.xlu0 %612
      %v614 = vrcp.pop 16.0
      %v615 = vmul.f32 %v604, %v614
      %v616 = vmul.f32 %v607, %v614
      %v617 = vmul.f32 %v610, %v614
      %v618 = vmul.f32 %v613, %v614
      %v619 = vsub.f32 %v587, %v615
      %v620 = vsub.f32 %v590, %v616
      %v621 = vsub.f32 %v595, %v617
      %v622 = vsub.f32 %v598, %v618
      %v623 = vmul.f32 %v619, %v619
      %v624 = vmul.f32 %v620, %v620
      %v625 = vmul.f32 %v621, %v621
      %v626 = vmul.f32 %v622, %v622
      %v627 = vsel %vm601, %v623, 0.0
      %628 = vadd.xlane.f32.xlu0 %v627
      %v629 = vpop.xlane.xlu0 %628
      %v630 = vsel %vm601, %v624, 0.0
      %631 = vadd.xlane.f32.xlu0 %v630
      %v632 = vpop.xlane.xlu0 %631
      %v633 = vsel %vm601, %v625, 0.0
      %634 = vadd.xlane.f32.xlu0 %v633
      %v635 = vpop.xlane.xlu0 %634
      %v636 = vsel %vm601, %v626, 0.0
      %637 = vadd.xlane.f32.xlu0 %v636
      %v638 = vpop.xlane.xlu0 %637
      %v639 = vmul.f32 %v629, %v614
      %v640 = vmul.f32 %v632, %v614
      %v641 = vmul.f32 %v635, %v614
      %v642 = vmul.f32 %v638, %v614
      %v643 = vadd.f32 %v639, 1e-05
      %v644 = vadd.f32 %v640, 1e-05
      %v645 = vadd.f32 %v641, 1e-05
      %v646 = vadd.f32 %v642, 1e-05
      %v647 = vrsqrt.pop %v643
      %v648 = vrsqrt.pop %v644
      %v649 = vrsqrt.pop %v645
      %v650 = vrsqrt.pop %v646
      %v651 = vmul.f32 %v619, %v647
      %v652 = vmul.f32 %v620, %v648
      %v653 = vmul.f32 %v621, %v649
      %v654 = vmul.f32 %v622, %v650
      %v655 = vld [vmem:[%s2] sm:$0xff]
      %v656 = vld [vmem:[%s2 + $0x8] sm:$0xff]
      %v657 = vld [vmem:[%s2 + $0x10] sm:$0xff]
      %v658 = vld [vmem:[%s2 + $0x18] sm:$0xff]
      %660 = vset.pattern.permute.xlu0 0
      %661 = vperm.xlu0 %660, %v655
      %v662 = vpop.permute.xlu0 %661
      %665 = vset.pattern.permute.xlu0 0
      %666 = vperm.xlu0 %665, %v656
      %v667 = vpop.permute.xlu0 %666
      %670 = vset.pattern.permute.xlu0 0
      %671 = vperm.xlu0 %670, %v657
      %v672 = vpop.permute.xlu0 %671
      %675 = vset.pattern.permute.xlu0 0
      %676 = vperm.xlu0 %675, %v658
      %v677 = vpop.permute.xlu0 %676
      %v679 = vmul.f32 %v651, %v662
      %v680 = vmul.f32 %v652, %v667
      %v681 = vmul.f32 %v653, %v672
      %v682 = vmul.f32 %v654, %v677
      %v683 = vld [vmem:[%s3] sm:$0xff]
      %v684 = vld [vmem:[%s3 + $0x8] sm:$0xff]
      %v685 = vld [vmem:[%s3 + $0x10] sm:$0xff]
      %v686 = vld [vmem:[%s3 + $0x18] sm:$0xff]
      %688 = vset.pattern.permute.xlu0 0
      %689 = vperm.xlu0 %688, %v683
      %v690 = vpop.permute.xlu0 %689
      %693 = vset.pattern.permute.xlu0 0
      %694 = vperm.xlu0 %693, %v684
      %v695 = vpop.permute.xlu0 %694
      %698 = vset.pattern.permute.xlu0 0
      %699 = vperm.xlu0 %698, %v685
      %v700 = vpop.permute.xlu0 %699
      %703 = vset.pattern.permute.xlu0 0
      %704 = vperm.xlu0 %703, %v686
      %v705 = vpop.permute.xlu0 %704
      %v707 = vadd.f32 %v679, %v690
      %v708 = vadd.f32 %v680, %v695
      %v709 = vadd.f32 %v681, %v700
      %v710 = vadd.f32 %v682, %v705
      %vm711 = vcmp.gt.f32.partialorder %v707, 0.0
      %vm712 = vcmp.gt.f32.partialorder %v708, 0.0
      %vm713 = vcmp.gt.f32.partialorder %v709, 0.0
      %vm714 = vcmp.gt.f32.partialorder %v710, 0.0
      %v715 = vmul.f32 %v707, 0.2
      %v716 = vmul.f32 %v708, 0.2
      %v717 = vmul.f32 %v709, 0.2
      %v718 = vmul.f32 %v710, 0.2
      %v719 = vsel %vm711, %v707, %v715
      %v720 = vsel %vm712, %v708, %v716
      %v721 = vsel %vm713, %v709, %v717
      %v722 = vsel %vm714, %v710, %v718
      %v723 = vpack.c.bf16 %v720, %v719
      %v724 = vpack.c.bf16 %v722, %v721
      %v727 = vunpack.c.l.b16 %v723
      %v728 = vunpack.c.h.b16 %v723
      %v729 = vunpack.c.l.b16 %v724
      %v730 = vunpack.c.h.b16 %v724
      %v731 = vpack.c.b16 %v727, %v727
      %v732 = vpack.c.b16 %v728, %v728
      %v733 = vpack.c.b16 %v729, %v729
      %v734 = vpack.c.b16 %v730, %v730
      %vm739 = vcmask 125952
      %740 = vst.msk [vmem:[%s197] sm:$0xf] %vm739, %v731
      %741 = vst.msk [vmem:[%s197 + $0x4] sm:$0xf] %vm739, %v732
      %742 = vst.msk [vmem:[%s197 + $0x8] sm:$0xf] %vm739, %v733
      %743 = vst.msk [vmem:[%s197 + $0xc] sm:$0xf] %vm739, %v734
      %p744 = scmp.lt.s32.totalorder %s15, 1
      %s745 = scalar_select %p744, %s15, 1
      %s746 = smul.addr %s745, 4
      %s747 = smul.addr %s746, 4
      %s748 = scalar_lea.vmem %s4, %s747
      // Predicated region
      $region37: #{wgan_discriminator.7} parent=35 // pred_check
        %p749 = pneg %p122
      $region38: #{wgan_discriminator.7} parent=35 // pred_check_branch
        %751 = sbr.rel (%p749) target = $region40
      $region39: #{wgan_discriminator.7} parent=35 // pred_region
        _
      $region40: #{wgan_discriminator.7} parent=35 // pred_fallthru
        _
    $region36: #{wgan_discriminator.7} parent=5 // pred_fallthru
      _
    %p752 = scmp.le.s32.totalorder 2, %s10
    // Predicated region
    $region41: #{wgan_discriminator.7} parent=5 // pred_check
      %p753 = pneg %p752
    $region42: #{wgan_discriminator.7} parent=5 // pred_check_branch
      %755 = sbr.rel (%p753) target = $region44
    $region43: #{wgan_discriminator.7} parent=5 // pred_region
      %s756 = ssub.s32 %s10, 2
      // Predicated region
      $region45: #{wgan_discriminator.7} parent=43 // pred_check
        %p757 = pneg %p128
      $region46: #{wgan_discriminator.7} parent=43 // pred_check_branch
        %759 = sbr.rel (%p757) target = $region48
      $region47: #{wgan_discriminator.7} parent=43 // pred_region
        %p760 = scmp.lt.s32.totalorder %s16, 1
        %s761 = scalar_select %p760, %s16, 1
        %s762 = smul.addr %s761, 4
        %s763 = smul.addr %s762, 4
        %s764 = scalar_lea.vmem %s4, %s763
      $region48: #{wgan_discriminator.7} parent=43 // pred_fallthru
        _
    $region44: #{wgan_discriminator.7} parent=5 // pred_fallthru
      _
  $region6: #{wgan_discriminator.7} parent=0 // loop_footer
    %s14 = sadd.s32 1, %s10
  $region7: #{wgan_discriminator.7} parent=0 // loop_footer_branch
    %9 = sbr.rel target = $region3
  $region8: #{wgan_discriminator.7} parent=0 // loop_exit
    _

</llo_original>
